<compile_context>
chip_gen: v6e
topology: v6e:2x2x1
jax: 0.10.0
libtpu: 0.0.40
codegen_flags: <defaults>
</compile_context>

<pallas_src>
import functools

import jax
import jax.numpy as jnp
from jax.experimental import pallas as pl
from jax.experimental.pallas import tpu as pltpu

INPUT_SIZE = 150          # fixed by fc1: Linear(2 * 150, 512)
LANES = 256               # conv planes lane-padded to a multiple of 128


# ---------------------------------------------------------------------------
# pltpu.roll capability probe (cached, runs once): use the XLU rotate for the
# conv shifts iff it lowers and matches jnp.roll semantics; otherwise fall back
# to the (slower but always-correct) slice+concat path.
# ---------------------------------------------------------------------------
_ROLL_OK = None


def _roll_matches_jnp():
    global _ROLL_OK
    if _ROLL_OK is None:
        try:
            x = jnp.tile(jnp.arange(LANES, dtype=jnp.float32)[None, :], (8, 1))

            def k(x_ref, o_ref):
                o_ref[...] = pltpu.roll(x_ref[...], 1, 1)

            y = pl.pallas_call(
                k, out_shape=jax.ShapeDtypeStruct(x.shape, x.dtype))(x)
            _ROLL_OK = bool(jnp.array_equal(jax.block_until_ready(y),
                                            jnp.roll(x, 1, axis=1)))
        except Exception:   # lowering unsupported -> safe slice+concat fallback
            _ROLL_OK = False
    return _ROLL_OK


# ---------------------------------------------------------------------------
# Kernel helpers
# ---------------------------------------------------------------------------
def _shift_right(x, use_roll):
    # y[:, l] = x[:, l-1]; the wrapped / inserted column is zero because the
    # lane-padding region of x (lanes >= 150, incl. lane 255) is zero.
    if use_roll:
        return pltpu.roll(x, 1, 1)
    z = jnp.zeros_like(x[:, :1])
    return jnp.concatenate([z, x[:, :-1]], axis=1)


def _shift_left(x, use_roll):
    # y[:, l] = x[:, l+1]; y[:, 149] = x[:, 150] = 0 (zero lane padding).
    if use_roll:
        return pltpu.roll(x, x.shape[-1] - 1, 1)
    z = jnp.zeros_like(x[:, :1])
    return jnp.concatenate([x[:, 1:], z], axis=1)


def _conv1d_2ch_relu(x0, x1, w_ref, b_ref, use_roll):
    """Conv1d(in=2, out=2, k=3, padding=1) + ReLU on lane-padded channel planes.

    w_ref: SMEM (12,)  flat layout w[o, c, k] -> w_ref[o*6 + c*3 + k]
    b_ref: SMEM (2,)
    """
    # Hoist all scalar SMEM reads out of the accumulation chain.
    w = [w_ref[i] for i in range(12)]
    b = [b_ref[0], b_ref[1]]
    taps = []
    for xc in (x0, x1):
        taps.append((_shift_right(xc, use_roll), xc, _shift_left(xc, use_roll)))
    outs = []
    for o in range(2):
        acc = None
        for c in range(2):
            for k in range(3):
                term = w[o * 6 + c * 3 + k] * taps[c][k]
                acc = term if acc is None else acc + term
        outs.append(jnp.maximum(acc + b[o], 0.0))
    return outs[0], outs[1]


def _pck_kernel(pred_ref, gt_ref,
                cw1_ref, cb1_ref, cw2_ref, cb2_ref,
                fw1a_ref, fw1b_ref, fb1_ref, fw2_ref, fb2_ref, fw3_ref, fb3_ref,
                out_ref, *, use_roll):
    x0 = pred_ref[...]                       # (TB, 256) f32, lanes >=150 are 0
    x1 = gt_ref[...]

    lane = jax.lax.broadcasted_iota(jnp.int32, x0.shape, 1)
    valid = lane < INPUT_SIZE

    # conv1 + relu; re-zero the padding lanes so conv2's window at l=149 (and
    # the roll wrap-around at l=0) sees the zero padding of the length-150 seq.
    y0, y1 = _conv1d_2ch_relu(x0, x1, cw1_ref, cb1_ref, use_roll)
    y0 = jnp.where(valid, y0, 0.0)
    y1 = jnp.where(valid, y1, 0.0)

    # conv2 + relu; padding lanes need no re-zeroing because fw1a/fw1b rows
    # >= 150 are zero, so any junk there never reaches fc1.
    z0, z1 = _conv1d_2ch_relu(y0, y1, cw2_ref, cb2_ref, use_roll)

    bf16 = jnp.bfloat16
    # fc1: channel-major flatten realized as two accumulated MXU dots.
    h1 = jnp.dot(z0.astype(bf16), fw1a_ref[...],
                 preferred_element_type=jnp.float32)
    h1 = h1 + jnp.dot(z1.astype(bf16), fw1b_ref[...],
                      preferred_element_type=jnp.float32)
    h1 = jnp.maximum(h1 + fb1_ref[...], 0.0)

    h2 = jnp.maximum(
        jnp.dot(h1.astype(bf16), fw2_ref[...],
                preferred_element_type=jnp.float32) + fb2_ref[...], 0.0)

    logits = (jnp.dot(h2.astype(bf16), fw3_ref[...],
                      preferred_element_type=jnp.float32) + fb3_ref[...])

    # sigmoid: exp + approx reciprocal both go to the EUP slot.
    out_ref[...] = pl.reciprocal(1.0 + jnp.exp(-logits), approx=True)


# ---------------------------------------------------------------------------
# Wrapper
# ---------------------------------------------------------------------------
def pck_aproximator(pred, gt, kernel_params, *, block_b=512):
    """pred, gt: (B, 150) f32.  kernel_params: output of prepare_kernel_params."""
    B, L = pred.shape
    assert L == INPUT_SIZE
    (cw1, cb1, cw2, cb2,
     fw1a, fw1b, fb1, fw2, fb2, fw3, fb3) = kernel_params

    # Lane-pad the two channel planes to 256 so every in-kernel lane op is
    # 128-aligned (roll, masks, fc1 K dim).
    pad = LANES - INPUT_SIZE
    pred_p = jnp.pad(pred.astype(jnp.float32), ((0, 0), (0, pad)))
    gt_p = jnp.pad(gt.astype(jnp.float32), ((0, 0), (0, pad)))

    if B <= block_b:
        tb = B                       # single block covering the whole batch
    else:
        tb = block_b
        assert tb % 8 == 0, "batch tile must be a multiple of 8"
    grid = (pl.cdiv(B, tb),)

    def resident(x):                 # full-size block, DMA'd once, stays in VMEM
        return pl.BlockSpec(x.shape, lambda i: (0,) * x.ndim)

    smem = pl.BlockSpec(memory_space=pltpu.MemorySpace.SMEM)
    kernel = functools.partial(_pck_kernel, use_roll=_roll_matches_jnp())

    return pl.pallas_call(
        kernel,
        out_shape=jax.ShapeDtypeStruct((B, 1), jnp.float32),
        grid=grid,
        in_specs=[
            pl.BlockSpec((tb, LANES), lambda i: (i, 0)),   # pred plane
            pl.BlockSpec((tb, LANES), lambda i: (i, 0)),   # gt plane
            smem, smem, smem, smem,                        # conv w/b scalars
            resident(fw1a), resident(fw1b), resident(fb1),
            resident(fw2), resident(fb2),
            resident(fw3), resident(fb3),
        ],
        out_specs=pl.BlockSpec((tb, 1), lambda i: (i, 0)),
        compiler_params=pltpu.CompilerParams(
            dimension_semantics=("parallel",),
            vmem_limit_bytes=32 * 1024 * 1024,
        ),
    )(pred_p, gt_p, cw1, cb1, cw2, cb2,
      fw1a, fw1b, fb1, fw2, fb2, fw3, fb3)


# ---------------------------------------------------------------------------
# Parameter handling (PyTorch-layout params -> kernel layout)
# ---------------------------------------------------------------------------
def init_params(key):
    """Deterministic PyTorch-like uniform init, PyTorch weight layouts."""
    ks = jax.random.split(key, 10)

    def unif(k, shape, fan_in):
        bound = 1.0 / jnp.sqrt(float(fan_in))
        return jax.random.uniform(k, shape, jnp.float32, -bound, bound)

    cw1 = unif(ks[0], (2, 2, 3), 2 * 3)
    cb1 = unif(ks[1], (2,), 2 * 3)
    cw2 = unif(ks[2], (2, 2, 3), 2 * 3)
    cb2 = unif(ks[3], (2,), 2 * 3)
    fw1 = unif(ks[4], (512, 2 * INPUT_SIZE), 2 * INPUT_SIZE)
    fb1 = unif(ks[5], (512,), 2 * INPUT_SIZE)
    fw2 = unif(ks[6], (256, 512), 512)
    fb2 = unif(ks[7], (256,), 512)
    fw3 = unif(ks[8], (1, 256), 256)
    fb3 = unif(ks[9], (1,), 256)
    return (cw1, cb1, cw2, cb2, fw1, fb1, fw2, fb2, fw3, fb3)


def prepare_kernel_params(params):
    """Conv scalars flattened for SMEM; FC weights transposed to (in, out),
    fc1 split per channel + zero-padded to 256 rows, bf16 for the MXU."""
    (cw1, cb1, cw2, cb2, fw1, fb1, fw2, fb2, fw3, fb3) = params

    fw1_t = fw1.T.astype(jnp.float32)                      # (300, 512)
    fw1a = jnp.zeros((LANES, 512), jnp.float32).at[:INPUT_SIZE].set(
        fw1_t[:INPUT_SIZE])
    fw1b = jnp.zeros((LANES, 512), jnp.float32).at[:INPUT_SIZE].set(
        fw1_t[INPUT_SIZE:2 * INPUT_SIZE])

    return (
        cw1.reshape(-1).astype(jnp.float32),               # (12,)
        cb1.astype(jnp.float32),                           # (2,)
        cw2.reshape(-1).astype(jnp.float32),
        cb2.astype(jnp.float32),
        fw1a.astype(jnp.bfloat16),                         # (256, 512)
        fw1b.astype(jnp.bfloat16),                         # (256, 512)
        fb1.reshape(1, -1).astype(jnp.float32),            # (1, 512)
        fw2.T.astype(jnp.bfloat16),                        # (512, 256)
        fb2.reshape(1, -1).astype(jnp.float32),            # (1, 256)
        fw3.T.astype(jnp.bfloat16),                        # (256, 1)
        fb3.reshape(1, -1).astype(jnp.float32),            # (1, 1)
    )


def reference_forward(pred, gt, params):
    """Pure-JAX f32 reference mirroring the PyTorch forward."""
    (cw1, cb1, cw2, cb2, fw1, fb1, fw2, fb2, fw3, fb3) = params
    x = jnp.stack((pred, gt), axis=1)                      # (B, 2, L)

    def conv(x, w, b):                                     # w: (out, in, k)
        xp = jnp.pad(x, ((0, 0), (0, 0), (1, 1)))
        out = []
        for o in range(2):
            acc = jnp.zeros_like(x[:, 0]) + b[o]
            for c in range(2):
                for k in range(3):
                    acc = acc + w[o, c, k] * xp[:, c, k:k + x.shape[-1]]
            out.append(acc)
        return jnp.stack(out, axis=1)

    x = jnp.maximum(conv(x, cw1, cb1), 0.0)
    x = jnp.maximum(conv(x, cw2, cb2), 0.0)
    x = x.reshape(x.shape[0], -1)                          # channel-major flatten
    x = jnp.maximum(x @ fw1.T + fb1, 0.0)
    x = jnp.maximum(x @ fw2.T + fb2, 0.0)
    return jax.nn.sigmoid(x @ fw3.T + fb3)


if __name__ == "__main__":
    key = jax.random.PRNGKey(0)
    kp, kg, kw = jax.random.split(key, 3)

    B = 32
    pred_skel = jax.random.normal(kp, (B, INPUT_SIZE), jnp.float32)
    gt_skel = jax.random.normal(kg, (B, INPUT_SIZE), jnp.float32)

    params = init_params(kw)
    kparams = prepare_kernel_params(params)

    # block_b=8 -> 4 grid steps, exercising the batch-tiled pipeline.
    out = pck_aproximator(pred_skel, gt_skel, kparams, block_b=8)
    out = jax.block_until_ready(out)

    ref = reference_forward(pred_skel, gt_skel, params)
    assert out.shape == (B, 1)
    # bf16 MXU operands + approx reciprocal -> looser tolerance than pure f32.
    assert jnp.allclose(out, ref, atol=2e-2, rtol=2e-2), (out, ref)

    print("KERNEL_OK")
</pallas_src>

<mosaic_0001>
module attributes {stable_mosaic.version = 11 : i64} {
  func.func @k(%arg0: memref<8x256xf32, #tpu.memory_space<vmem>>, %arg1: memref<8x256xf32, #tpu.memory_space<vmem>>) attributes {dimension_semantics = [], scalar_prefetch = 0 : i64, scratch_operands = 0 : i64, tpu.core_type = #tpu.core_type<tc>} {
    %c0 = arith.constant 0 : index
    %c0_0 = arith.constant 0 : index
    %0 = vector.load %arg0[%c0, %c0_0] : memref<8x256xf32, #tpu.memory_space<vmem>>, vector<8x256xf32>
    %c1_i32 = arith.constant 1 : i32
    %1 = tpu.dynamic_rotate %0 by %c1_i32 dim 1 : vector<8x256xf32>, i32 -> vector<8x256xf32>
    %c0_1 = arith.constant 0 : index
    %c0_2 = arith.constant 0 : index
    %2 = vector.load %arg1[%c0_1, %c0_2] : memref<8x256xf32, #tpu.memory_space<vmem>>, vector<8x256xf32>
    tpu.vector_store %arg1[%c0_1, %c0_2], %1 {strides = array<i32>} : memref<8x256xf32, #tpu.memory_space<vmem>>, vector<8x256xf32>,
    return
  }
}

module attributes {stable_mosaic.version = 11 : i64} {
  func.func @_pck_kernel(%arg0: i32, %arg1: memref<8x256xf32, #tpu.memory_space<vmem>>, %arg2: memref<8x256xf32, #tpu.memory_space<vmem>>, %arg3: memref<12xf32, #tpu.memory_space<smem>>, %arg4: memref<2xf32, #tpu.memory_space<smem>>, %arg5: memref<12xf32, #tpu.memory_space<smem>>, %arg6: memref<2xf32, #tpu.memory_space<smem>>, %arg7: memref<256x512xbf16, #tpu.memory_space<vmem>>, %arg8: memref<256x512xbf16, #tpu.memory_space<vmem>>, %arg9: memref<1x512xf32, #tpu.memory_space<vmem>>, %arg10: memref<512x256xbf16, #tpu.memory_space<vmem>>, %arg11: memref<1x256xf32, #tpu.memory_space<vmem>>, %arg12: memref<256x1xbf16, #tpu.memory_space<vmem>>, %arg13: memref<1x1xf32, #tpu.memory_space<vmem>>, %arg14: memref<8x1xf32, #tpu.memory_space<vmem>>) attributes {dimension_semantics = [#tpu.dimension_semantics<parallel>], iteration_bounds = array<i64: 4>, scalar_prefetch = 0 : i64, scratch_operands = 0 : i64, tpu.core_type = #tpu.core_type<tc>, window_params = [{transform_indices = @transform_0, window_bounds = array<i64: 8, 256>}, {transform_indices = @transform_1, window_bounds = array<i64: 8, 256>}, {transform_indices = @transform_2, window_bounds = array<i64: 12>}, {transform_indices = @transform_3, window_bounds = array<i64: 2>}, {transform_indices = @transform_4, window_bounds = array<i64: 12>}, {transform_indices = @transform_5, window_bounds = array<i64: 2>}, {pipeline_mode = #tpu.pipeline_mode<synchronous>, transform_indices = @transform_6, window_bounds = array<i64: 256, 512>}, {pipeline_mode = #tpu.pipeline_mode<synchronous>, transform_indices = @transform_7, window_bounds = array<i64: 256, 512>}, {pipeline_mode = #tpu.pipeline_mode<synchronous>, transform_indices = @transform_8, window_bounds = array<i64: 1, 512>}, {pipeline_mode = #tpu.pipeline_mode<synchronous>, transform_indices = @transform_9, window_bounds = array<i64: 512, 256>}, {pipeline_mode = #tpu.pipeline_mode<synchronous>, transform_indices = @transform_10, window_bounds = array<i64: 1, 256>}, {pipeline_mode = #tpu.pipeline_mode<synchronous>, transform_indices = @transform_11, window_bounds = array<i64: 256, 1>}, {pipeline_mode = #tpu.pipeline_mode<synchronous>, transform_indices = @transform_12, window_bounds = array<i64: 1, 1>}, {transform_indices = @transform_13, window_bounds = array<i64: 8, 1>}]} {
    %c0 = arith.constant 0 : index
    %c0_0 = arith.constant 0 : index
    %0 = vector.load %arg1[%c0, %c0_0] : memref<8x256xf32, #tpu.memory_space<vmem>>, vector<8x256xf32>
    %c0_1 = arith.constant 0 : index
    %c0_2 = arith.constant 0 : index
    %1 = vector.load %arg2[%c0_1, %c0_2] : memref<8x256xf32, #tpu.memory_space<vmem>>, vector<8x256xf32>
    %2 = tpu.iota {dimensions = array<i32: 1>} : vector<8x256xi32>
    %c150_i32 = arith.constant 150 : i32
    %3 = vector.broadcast %c150_i32 : i32 to vector<8x256xi32>
    %4 = arith.cmpi slt, %2, %3 : vector<8x256xi32>
    %c0_3 = arith.constant 0 : index
    %5 = memref.load %arg3[%c0_3] : memref<12xf32, #tpu.memory_space<smem>>
    %c1 = arith.constant 1 : index
    %6 = memref.load %arg3[%c1] : memref<12xf32, #tpu.memory_space<smem>>
    %c2 = arith.constant 2 : index
    %7 = memref.load %arg3[%c2] : memref<12xf32, #tpu.memory_space<smem>>
    %c3 = arith.constant 3 : index
    %8 = memref.load %arg3[%c3] : memref<12xf32, #tpu.memory_space<smem>>
    %c4 = arith.constant 4 : index
    %9 = memref.load %arg3[%c4] : memref<12xf32, #tpu.memory_space<smem>>
    %c5 = arith.constant 5 : index
    %10 = memref.load %arg3[%c5] : memref<12xf32, #tpu.memory_space<smem>>
    %c6 = arith.constant 6 : index
    %11 = memref.load %arg3[%c6] : memref<12xf32, #tpu.memory_space<smem>>
    %c7 = arith.constant 7 : index
    %12 = memref.load %arg3[%c7] : memref<12xf32, #tpu.memory_space<smem>>
    %c8 = arith.constant 8 : index
    %13 = memref.load %arg3[%c8] : memref<12xf32, #tpu.memory_space<smem>>
    %c9 = arith.constant 9 : index
    %14 = memref.load %arg3[%c9] : memref<12xf32, #tpu.memory_space<smem>>
    %c10 = arith.constant 10 : index
    %15 = memref.load %arg3[%c10] : memref<12xf32, #tpu.memory_space<smem>>
    %c11 = arith.constant 11 : index
    %16 = memref.load %arg3[%c11] : memref<12xf32, #tpu.memory_space<smem>>
    %c0_4 = arith.constant 0 : index
    %17 = memref.load %arg4[%c0_4] : memref<2xf32, #tpu.memory_space<smem>>
    %c1_5 = arith.constant 1 : index
    %18 = memref.load %arg4[%c1_5] : memref<2xf32, #tpu.memory_space<smem>>
    %cst = arith.constant 0.000000e+00 : f32
    %19 = vector.broadcast %cst : f32 to vector<8x1xf32>
    %20 = vector.extract_strided_slice %0 {offsets = [0, 0], sizes = [8, 255], strides = [1, 1]} : vector<8x256xf32> to vector<8x255xf32>
    %21 = tpu.concatenate %19, %20 in 1 : vector<8x1xf32>, vector<8x255xf32> -> vector<8x256xf32>
    %cst_6 = arith.constant 0.000000e+00 : f32
    %22 = vector.broadcast %cst_6 : f32 to vector<8x1xf32>
    %23 = vector.extract_strided_slice %0 {offsets = [0, 1], sizes = [8, 255], strides = [1, 1]} : vector<8x256xf32> to vector<8x255xf32>
    %24 = tpu.concatenate %23, %22 in 1 : vector<8x255xf32>, vector<8x1xf32> -> vector<8x256xf32>
    %cst_7 = arith.constant 0.000000e+00 : f32
    %25 = vector.broadcast %cst_7 : f32 to vector<8x1xf32>
    %26 = vector.extract_strided_slice %1 {offsets = [0, 0], sizes = [8, 255], strides = [1, 1]} : vector<8x256xf32> to vector<8x255xf32>
    %27 = tpu.concatenate %25, %26 in 1 : vector<8x1xf32>, vector<8x255xf32> -> vector<8x256xf32>
    %cst_8 = arith.constant 0.000000e+00 : f32
    %28 = vector.broadcast %cst_8 : f32 to vector<8x1xf32>
    %29 = vector.extract_strided_slice %1 {offsets = [0, 1], sizes = [8, 255], strides = [1, 1]} : vector<8x256xf32> to vector<8x255xf32>
    %30 = tpu.concatenate %29, %28 in 1 : vector<8x255xf32>, vector<8x1xf32> -> vector<8x256xf32>
    %31 = vector.broadcast %5 : f32 to vector<8x256xf32>
    %32 = arith.mulf %31, %21 : vector<8x256xf32>
    %33 = vector.broadcast %6 : f32 to vector<8x256xf32>
    %34 = arith.mulf %33, %0 : vector<8x256xf32>
    %35 = arith.addf %32, %34 : vector<8x256xf32>
    %36 = vector.broadcast %7 : f32 to vector<8x256xf32>
    %37 = arith.mulf %36, %24 : vector<8x256xf32>
    %38 = arith.addf %35, %37 : vector<8x256xf32>
    %39 = vector.broadcast %8 : f32 to vector<8x256xf32>
    %40 = arith.mulf %39, %27 : vector<8x256xf32>
    %41 = arith.addf %38, %40 : vector<8x256xf32>
    %42 = vector.broadcast %9 : f32 to vector<8x256xf32>
    %43 = arith.mulf %42, %1 : vector<8x256xf32>
    %44 = arith.addf %41, %43 : vector<8x256xf32>
    %45 = vector.broadcast %10 : f32 to vector<8x256xf32>
    %46 = arith.mulf %45, %30 : vector<8x256xf32>
    %47 = arith.addf %44, %46 : vector<8x256xf32>
    %48 = vector.broadcast %17 : f32 to vector<8x256xf32>
    %49 = arith.addf %47, %48 : vector<8x256xf32>
    %cst_9 = arith.constant 0.000000e+00 : f32
    %50 = vector.broadcast %cst_9 : f32 to vector<8x256xf32>
    %51 = arith.maximumf %49, %50 : vector<8x256xf32>
    %52 = vector.broadcast %11 : f32 to vector<8x256xf32>
    %53 = arith.mulf %52, %21 : vector<8x256xf32>
    %54 = vector.broadcast %12 : f32 to vector<8x256xf32>
    %55 = arith.mulf %54, %0 : vector<8x256xf32>
    %56 = arith.addf %53, %55 : vector<8x256xf32>
    %57 = vector.broadcast %13 : f32 to vector<8x256xf32>
    %58 = arith.mulf %57, %24 : vector<8x256xf32>
    %59 = arith.addf %56, %58 : vector<8x256xf32>
    %60 = vector.broadcast %14 : f32 to vector<8x256xf32>
    %61 = arith.mulf %60, %27 : vector<8x256xf32>
    %62 = arith.addf %59, %61 : vector<8x256xf32>
    %63 = vector.broadcast %15 : f32 to vector<8x256xf32>
    %64 = arith.mulf %63, %1 : vector<8x256xf32>
    %65 = arith.addf %62, %64 : vector<8x256xf32>
    %66 = vector.broadcast %16 : f32 to vector<8x256xf32>
    %67 = arith.mulf %66, %30 : vector<8x256xf32>
    %68 = arith.addf %65, %67 : vector<8x256xf32>
    %69 = vector.broadcast %18 : f32 to vector<8x256xf32>
    %70 = arith.addf %68, %69 : vector<8x256xf32>
    %cst_10 = arith.constant 0.000000e+00 : f32
    %71 = vector.broadcast %cst_10 : f32 to vector<8x256xf32>
    %72 = arith.maximumf %70, %71 : vector<8x256xf32>
    %cst_11 = arith.constant 0.000000e+00 : f32
    %73 = vector.broadcast %cst_11 : f32 to vector<8x256xf32>
    %74 = arith.select %4, %51, %73 : vector<8x256xi1>, vector<8x256xf32>
    %cst_12 = arith.constant 0.000000e+00 : f32
    %75 = vector.broadcast %cst_12 : f32 to vector<8x256xf32>
    %76 = arith.select %4, %72, %75 : vector<8x256xi1>, vector<8x256xf32>
    %c0_13 = arith.constant 0 : index
    %77 = memref.load %arg5[%c0_13] : memref<12xf32, #tpu.memory_space<smem>>
    %c1_14 = arith.constant 1 : index
    %78 = memref.load %arg5[%c1_14] : memref<12xf32, #tpu.memory_space<smem>>
    %c2_15 = arith.constant 2 : index
    %79 = memref.load %arg5[%c2_15] : memref<12xf32, #tpu.memory_space<smem>>
    %c3_16 = arith.constant 3 : index
    %80 = memref.load %arg5[%c3_16] : memref<12xf32, #tpu.memory_space<smem>>
    %c4_17 = arith.constant 4 : index
    %81 = memref.load %arg5[%c4_17] : memref<12xf32, #tpu.memory_space<smem>>
    %c5_18 = arith.constant 5 : index
    %82 = memref.load %arg5[%c5_18] : memref<12xf32, #tpu.memory_space<smem>>
    %c6_19 = arith.constant 6 : index
    %83 = memref.load %arg5[%c6_19] : memref<12xf32, #tpu.memory_space<smem>>
    %c7_20 = arith.constant 7 : index
    %84 = memref.load %arg5[%c7_20] : memref<12xf32, #tpu.memory_space<smem>>
    %c8_21 = arith.constant 8 : index
    %85 = memref.load %arg5[%c8_21] : memref<12xf32, #tpu.memory_space<smem>>
    %c9_22 = arith.constant 9 : index
    %86 = memref.load %arg5[%c9_22] : memref<12xf32, #tpu.memory_space<smem>>
    %c10_23 = arith.constant 10 : index
    %87 = memref.load %arg5[%c10_23] : memref<12xf32, #tpu.memory_space<smem>>
    %c11_24 = arith.constant 11 : index
    %88 = memref.load %arg5[%c11_24] : memref<12xf32, #tpu.memory_space<smem>>
    %c0_25 = arith.constant 0 : index
    %89 = memref.load %arg6[%c0_25] : memref<2xf32, #tpu.memory_space<smem>>
    %c1_26 = arith.constant 1 : index
    %90 = memref.load %arg6[%c1_26] : memref<2xf32, #tpu.memory_space<smem>>
    %cst_27 = arith.constant 0.000000e+00 : f32
    %91 = vector.broadcast %cst_27 : f32 to vector<8x1xf32>
    %92 = vector.extract_strided_slice %74 {offsets = [0, 0], sizes = [8, 255], strides = [1, 1]} : vector<8x256xf32> to vector<8x255xf32>
    %93 = tpu.concatenate %91, %92 in 1 : vector<8x1xf32>, vector<8x255xf32> -> vector<8x256xf32>
    %cst_28 = arith.constant 0.000000e+00 : f32
    %94 = vector.broadcast %cst_28 : f32 to vector<8x1xf32>
    %95 = vector.extract_strided_slice %74 {offsets = [0, 1], sizes = [8, 255], strides = [1, 1]} : vector<8x256xf32> to vector<8x255xf32>
    %96 = tpu.concatenate %95, %94 in 1 : vector<8x255xf32>, vector<8x1xf32> -> vector<8x256xf32>
    %cst_29 = arith.constant 0.000000e+00 : f32
    %97 = vector.broadcast %cst_29 : f32 to vector<8x1xf32>
    %98 = vector.extract_strided_slice %76 {offsets = [0, 0], sizes = [8, 255], strides = [1, 1]} : vector<8x256xf32> to vector<8x255xf32>
    %99 = tpu.concatenate %97, %98 in 1 : vector<8x1xf32>, vector<8x255xf32> -> vector<8x256xf32>
    %cst_30 = arith.constant 0.000000e+00 : f32
    %100 = vector.broadcast %cst_30 : f32 to vector<8x1xf32>
    %101 = vector.extract_strided_slice %76 {offsets = [0, 1], sizes = [8, 255], strides = [1, 1]} : vector<8x256xf32> to vector<8x255xf32>
    %102 = tpu.concatenate %101, %100 in 1 : vector<8x255xf32>, vector<8x1xf32> -> vector<8x256xf32>
    %103 = vector.broadcast %77 : f32 to vector<8x256xf32>
    %104 = arith.mulf %103, %93 : vector<8x256xf32>
    %105 = vector.broadcast %78 : f32 to vector<8x256xf32>
    %106 = arith.mulf %105, %74 : vector<8x256xf32>
    %107 = arith.addf %104, %106 : vector<8x256xf32>
    %108 = vector.broadcast %79 : f32 to vector<8x256xf32>
    %109 = arith.mulf %108, %96 : vector<8x256xf32>
    %110 = arith.addf %107, %109 : vector<8x256xf32>
    %111 = vector.broadcast %80 : f32 to vector<8x256xf32>
    %112 = arith.mulf %111, %99 : vector<8x256xf32>
    %113 = arith.addf %110, %112 : vector<8x256xf32>
    %114 = vector.broadcast %81 : f32 to vector<8x256xf32>
    %115 = arith.mulf %114, %76 : vector<8x256xf32>
    %116 = arith.addf %113, %115 : vector<8x256xf32>
    %117 = vector.broadcast %82 : f32 to vector<8x256xf32>
    %118 = arith.mulf %117, %102 : vector<8x256xf32>
    %119 = arith.addf %116, %118 : vector<8x256xf32>
    %120 = vector.broadcast %89 : f32 to vector<8x256xf32>
    %121 = arith.addf %119, %120 : vector<8x256xf32>
    %cst_31 = arith.constant 0.000000e+00 : f32
    %122 = vector.broadcast %cst_31 : f32 to vector<8x256xf32>
    %123 = arith.maximumf %121, %122 : vector<8x256xf32>
    %124 = vector.broadcast %83 : f32 to vector<8x256xf32>
    %125 = arith.mulf %124, %93 : vector<8x256xf32>
    %126 = vector.broadcast %84 : f32 to vector<8x256xf32>
    %127 = arith.mulf %126, %74 : vector<8x256xf32>
    %128 = arith.addf %125, %127 : vector<8x256xf32>
    %129 = vector.broadcast %85 : f32 to vector<8x256xf32>
    %130 = arith.mulf %129, %96 : vector<8x256xf32>
    %131 = arith.addf %128, %130 : vector<8x256xf32>
    %132 = vector.broadcast %86 : f32 to vector<8x256xf32>
    %133 = arith.mulf %132, %99 : vector<8x256xf32>
    %134 = arith.addf %131, %133 : vector<8x256xf32>
    %135 = vector.broadcast %87 : f32 to vector<8x256xf32>
    %136 = arith.mulf %135, %76 : vector<8x256xf32>
    %137 = arith.addf %134, %136 : vector<8x256xf32>
    %138 = vector.broadcast %88 : f32 to vector<8x256xf32>
    %139 = arith.mulf %138, %102 : vector<8x256xf32>
    %140 = arith.addf %137, %139 : vector<8x256xf32>
    %141 = vector.broadcast %90 : f32 to vector<8x256xf32>
    %142 = arith.addf %140, %141 : vector<8x256xf32>
    %cst_32 = arith.constant 0.000000e+00 : f32
    %143 = vector.broadcast %cst_32 : f32 to vector<8x256xf32>
    %144 = arith.maximumf %142, %143 : vector<8x256xf32>
    %145 = arith.truncf %123 : vector<8x256xf32> to vector<8x256xbf16>
    %c0_33 = arith.constant 0 : index
    %c0_34 = arith.constant 0 : index
    %146 = vector.load %arg7[%c0_33, %c0_34] : memref<256x512xbf16, #tpu.memory_space<vmem>>, vector<256x512xbf16>
    %cst_35 = arith.constant dense<0.000000e+00> : vector<8x512xf32>
    %147 = tpu.matmul %145, %146, %cst_35 {dimension_numbers = #tpu.dot_dimension_numbers<[1], [0], [0], [1], [0, 0, 1, 1], [], []>} : vector<8x256xbf16>, vector<256x512xbf16>, vector<8x512xf32> -> vector<8x512xf32>
    %148 = arith.truncf %144 : vector<8x256xf32> to vector<8x256xbf16>
    %c0_36 = arith.constant 0 : index
    %c0_37 = arith.constant 0 : index
    %149 = vector.load %arg8[%c0_36, %c0_37] : memref<256x512xbf16, #tpu.memory_space<vmem>>, vector<256x512xbf16>
    %cst_38 = arith.constant dense<0.000000e+00> : vector<8x512xf32>
    %150 = tpu.matmul %148, %149, %cst_38 {dimension_numbers = #tpu.dot_dimension_numbers<[1], [0], [0], [1], [0, 0, 1, 1], [], []>} : vector<8x256xbf16>, vector<256x512xbf16>, vector<8x512xf32> -> vector<8x512xf32>
    %151 = arith.addf %147, %150 : vector<8x512xf32>
    %c0_39 = arith.constant 0 : index
    %c0_40 = arith.constant 0 : index
    %152 = vector.load %arg9[%c0_39, %c0_40] : memref<1x512xf32, #tpu.memory_space<vmem>>, vector<1x512xf32>
    %153 = vector.broadcast %152 : vector<1x512xf32> to vector<8x512xf32>
    %154 = arith.addf %151, %153 : vector<8x512xf32>
    %cst_41 = arith.constant 0.000000e+00 : f32
    %155 = vector.broadcast %cst_41 : f32 to vector<8x512xf32>
    %156 = arith.maximumf %154, %155 : vector<8x512xf32>
    %157 = arith.truncf %156 : vector<8x512xf32> to vector<8x512xbf16>
    %c0_42 = arith.constant 0 : index
    %c0_43 = arith.constant 0 : index
    %158 = vector.load %arg10[%c0_42, %c0_43] : memref<512x256xbf16, #tpu.memory_space<vmem>>, vector<512x256xbf16>
    %cst_44 = arith.constant dense<0.000000e+00> : vector<8x256xf32>
    %159 = tpu.matmul %157, %158, %cst_44 {dimension_numbers = #tpu.dot_dimension_numbers<[1], [0], [0], [1], [0, 0, 1, 1], [], []>} : vector<8x512xbf16>, vector<512x256xbf16>, vector<8x256xf32> -> vector<8x256xf32>
    %c0_45 = arith.constant 0 : index
    %c0_46 = arith.constant 0 : index
    %160 = vector.load %arg11[%c0_45, %c0_46] : memref<1x256xf32, #tpu.memory_space<vmem>>, vector<1x256xf32>
    %161 = vector.broadcast %160 : vector<1x256xf32> to vector<8x256xf32>
    %162 = arith.addf %159, %161 : vector<8x256xf32>
    %cst_47 = arith.constant 0.000000e+00 : f32
    %163 = vector.broadcast %cst_47 : f32 to vector<8x256xf32>
    %164 = arith.maximumf %162, %163 : vector<8x256xf32>
    %165 = arith.truncf %164 : vector<8x256xf32> to vector<8x256xbf16>
    %c0_48 = arith.constant 0 : index
    %c0_49 = arith.constant 0 : index
    %166 = vector.load %arg12[%c0_48, %c0_49] : memref<256x1xbf16, #tpu.memory_space<vmem>>, vector<256x1xbf16>
    %cst_50 = arith.constant dense<0.000000e+00> : vector<8x1xf32>
    %167 = tpu.matmul %165, %166, %cst_50 {dimension_numbers = #tpu.dot_dimension_numbers<[1], [0], [0], [1], [0, 0, 1, 1], [], []>} : vector<8x256xbf16>, vector<256x1xbf16>, vector<8x1xf32> -> vector<8x1xf32>
    %c0_51 = arith.constant 0 : index
    %c0_52 = arith.constant 0 : index
    %168 = vector.load %arg13[%c0_51, %c0_52] : memref<1x1xf32, #tpu.memory_space<vmem>>, vector<1x1xf32>
    %169 = vector.broadcast %168 : vector<1x1xf32> to vector<8x1xf32>
    %170 = arith.addf %167, %169 : vector<8x1xf32>
    %cst_53 = arith.constant 0.000000e+00 : f32
    %171 = vector.broadcast %cst_53 : f32 to vector<8x1xf32>
    %172 = arith.subf %171, %170 : vector<8x1xf32>
    %173 = math.exp %172 : vector<8x1xf32>
    %cst_54 = arith.constant 1.000000e+00 : f32
    %174 = vector.broadcast %cst_54 : f32 to vector<8x1xf32>
    %175 = arith.addf %174, %173 : vector<8x1xf32>
    %176 = tpu.reciprocal %175 {approx = true} : vector<8x1xf32> -> vector<8x1xf32>
    %c0_55 = arith.constant 0 : index
    %c0_56 = arith.constant 0 : index
    %177 = vector.load %arg14[%c0_55, %c0_56] : memref<8x1xf32, #tpu.memory_space<vmem>>, vector<8x1xf32>
    tpu.vector_store %arg14[%c0_55, %c0_56], %176 {strides = array<i32>} : memref<8x1xf32, #tpu.memory_space<vmem>>, vector<8x1xf32>,
    return
  }
  func.func @transform_0(%arg0: i32) -> (i32, i32) {
    %c0_i32 = arith.constant 0 : i32
    %c0_i32_0 = arith.constant 0 : i32
    return %arg0, %c0_i32 : i32, i32
  }
  func.func @transform_1(%arg0: i32) -> (i32, i32) {
    %c0_i32 = arith.constant 0 : i32
    %c0_i32_0 = arith.constant 0 : i32
    return %arg0, %c0_i32 : i32, i32
  }
  func.func @transform_2(%arg0: i32) -> i32 {
    %c0_i32 = arith.constant 0 : i32
    %c0_i32_0 = arith.constant 0 : i32
    return %c0_i32 : i32
  }
  func.func @transform_3(%arg0: i32) -> i32 {
    %c0_i32 = arith.constant 0 : i32
    %c0_i32_0 = arith.constant 0 : i32
    return %c0_i32 : i32
  }
  func.func @transform_4(%arg0: i32) -> i32 {
    %c0_i32 = arith.constant 0 : i32
    %c0_i32_0 = arith.constant 0 : i32
    return %c0_i32 : i32
  }
  func.func @transform_5(%arg0: i32) -> i32 {
    %c0_i32 = arith.constant 0 : i32
    %c0_i32_0 = arith.constant 0 : i32
    return %c0_i32 : i32
  }
  func.func @transform_6(%arg0: i32) -> (i32, i32) {
    %c0_i32 = arith.constant 0 : i32
    %c0_i32_0 = arith.constant 0 : i32
    %c0_i32_1 = arith.constant 0 : i32
    return %c0_i32, %c0_i32_0 : i32, i32
  }
  func.func @transform_7(%arg0: i32) -> (i32, i32) {
    %c0_i32 = arith.constant 0 : i32
    %c0_i32_0 = arith.constant 0 : i32
    %c0_i32_1 = arith.constant 0 : i32
    return %c0_i32, %c0_i32_0 : i32, i32
  }
  func.func @transform_8(%arg0: i32) -> (i32, i32) {
    %c0_i32 = arith.constant 0 : i32
    %c0_i32_0 = arith.constant 0 : i32
    %c0_i32_1 = arith.constant 0 : i32
    return %c0_i32, %c0_i32_0 : i32, i32
  }
  func.func @transform_9(%arg0: i32) -> (i32, i32) {
    %c0_i32 = arith.constant 0 : i32
    %c0_i32_0 = arith.constant 0 : i32
    %c0_i32_1 = arith.constant 0 : i32
    return %c0_i32, %c0_i32_0 : i32, i32
  }
  func.func @transform_10(%arg0: i32) -> (i32, i32) {
    %c0_i32 = arith.constant 0 : i32
    %c0_i32_0 = arith.constant 0 : i32
    %c0_i32_1 = arith.constant 0 : i32
    return %c0_i32, %c0_i32_0 : i32, i32
  }
  func.func @transform_11(%arg0: i32) -> (i32, i32) {
    %c0_i32 = arith.constant 0 : i32
    %c0_i32_0 = arith.constant 0 : i32
    %c0_i32_1 = arith.constant 0 : i32
    return %c0_i32, %c0_i32_0 : i32, i32
  }
  func.func @transform_12(%arg0: i32) -> (i32, i32) {
    %c0_i32 = arith.constant 0 : i32
    %c0_i32_0 = arith.constant 0 : i32
    %c0_i32_1 = arith.constant 0 : i32
    return %c0_i32, %c0_i32_0 : i32, i32
  }
  func.func @transform_13(%arg0: i32) -> (i32, i32) {
    %c0_i32 = arith.constant 0 : i32
    %c0_i32_0 = arith.constant 0 : i32
    return %arg0, %c0_i32 : i32, i32
  }
}

</mosaic_0001>

<llo_original>
// kernel: tpu_custom_call.1
$region0: #{tpu_custom_call.1}
  #allocation0 [shape = 'u32[]', space=smem, size = 0x4, offset = 0x4, fixed_abs, tag = 'smem constant byte address 0x4 - core index']
  #allocation1 [shape = 'u32[144,128]{1,0:T(1,128)}', space=vmem, size = 0x12000, scoped, tag = 'internal scratch']
  %s0 = inlined_call_operand.hbm [shape: f32[8,256], index: 0, kind: input, shape index: {}]
  %s1 = inlined_call_operand.hbm [shape: f32[8,256], index: 1, kind: output, shape index: {}]
  %s2 = sld [smem:[#allocation0]]
  $region18: #{tpu_custom_call.1} parent=0
    _
  %s4 = ssub.s32 1, %s2
  %s5 = scalar_select 0, %s4, %s2
  $region1: #{tpu_custom_call.1} parent=0
    #allocation2 [shape = 'u8[8192]{0}', space=vmem, size = 0x2000, scoped, tag = 'input window, operand 0, single buffered']
    #allocation3 [shape = 's32[1]{0}', space=sflag, size = 0x4, scoped, tag = 'scoped memory for tpu_custom_call.1']
    #allocation4 [shape = 's32[1]{0}', space=sflag, size = 0x4, scoped, tag = 'scoped memory for tpu_custom_call.1']
    #allocation5 [shape = 'u8[8192]{0}', space=vmem, size = 0x2000, scoped, tag = 'output window, operand 0, single buffered']
    %6 = vsyncpa [#allocation3], 0
    %7 = vsyncpa [#allocation4], 0
    // Predicated region
    $region2: #{tpu_custom_call.1} parent=1 // pred_check
      _
    $region3: #{tpu_custom_call.1} parent=1 // pred_check_branch
      %9 = sbr.rel (0) target = $region5
    $region4: #{tpu_custom_call.1} parent=1 // pred_region
      %s11 = ssub.s32 256, 256
      %12 = vsyncadd [#allocation3], %s11
      %s14 = sshll.u32 [#allocation2], 4
      %s15 = int_to_ptr.vmem [resolvable:$true] %s14
      %17 = dma.hbm_to_vmem [thread:$0]  %s0, 256, %s15, [#allocation3]
    $region5: #{tpu_custom_call.1} parent=1 // pred_fallthru
      _
    // Predicated region
    $region6: #{tpu_custom_call.1} parent=1 // pred_check
      _
    $region7: #{tpu_custom_call.1} parent=1 // pred_check_branch
      %19 = sbr.rel (0) target = $region9
    $region8: #{tpu_custom_call.1} parent=1 // pred_region
      %20 = dma.done [#allocation3], 256
    $region9: #{tpu_custom_call.1} parent=1 // pred_fallthru
      _
    %v21 = vld [vmem:[#allocation2] sm:$0xff]
    %v22 = vld [vmem:[#allocation2 + $0x8] sm:$0xff]
    %23 = vrot.lane.b32.xlu0 %v21, 1
    %v24 = vpop.permute.xlu0 %23
    %25 = vrot.lane.b32.xlu0 %v22, 1
    %v26 = vpop.permute.xlu0 %25
    %v27 = vlaneseq
    %v28 = vand.u32 %v27, 127
    %vm29 = vcmp.lt.s32.totalorder %v28, 1
    %v30 = vsel %vm29, %v24, %v26
    %v31 = vsel %vm29, %v26, %v24
    %32 = vst [vmem:[#allocation5] sm:$0xff] %v31
    %33 = vst [vmem:[#allocation5 + $0x8] sm:$0xff] %v30
    // Predicated region
    $region10: #{tpu_custom_call.1} parent=1 // pred_check
      _
    $region11: #{tpu_custom_call.1} parent=1 // pred_check_branch
      %35 = sbr.rel (0) target = $region13
    $region12: #{tpu_custom_call.1} parent=1 // pred_region
      %s37 = ssub.s32 256, 256
      %38 = vsyncadd [#allocation4], %s37
      %s40 = sshll.u32 [#allocation5], 4
      %s41 = int_to_ptr.vmem [resolvable:$true] %s40
      %43 = dma.vmem_to_hbm [thread:$0]  %s41, 256, %s1, [#allocation4]
    $region13: #{tpu_custom_call.1} parent=1 // pred_fallthru
      _
    // Predicated region
    $region14: #{tpu_custom_call.1} parent=1 // pred_check
      _
    $region15: #{tpu_custom_call.1} parent=1 // pred_check_branch
      %45 = sbr.rel (0) target = $region17
    $region16: #{tpu_custom_call.1} parent=1 // pred_region
      %46 = dma.done [#allocation4], 256
    $region17: #{tpu_custom_call.1} parent=1 // pred_fallthru
      _
    %47 = vsyncpa [#allocation3], 1
    %48 = vsyncpa [#allocation4], 1

// kernel: tpu_custom_call.1
$region0: #{tpu_custom_call.1}
  #allocation0 [shape = 'u32[]', space=smem, size = 0x4, offset = 0x4, fixed_abs, tag = 'smem constant byte address 0x4 - core index']
  #allocation1 [shape = 'u32[144,128]{1,0:T(1,128)}', space=vmem, size = 0x12000, scoped, tag = 'internal scratch']
  #allocation2 [shape = 'f32[1,1]{1,0:T(1,128)S(1)}', space=vmem, size = 0x200, scoped, tag = 'scoped memory for tpu_custom_call.1']
  %s0 = inlined_call_operand.vmem [shape: f32[32,256], index: 0, kind: input, shape index: {}]
  %s1 = inlined_call_operand.vmem [shape: f32[32,256], index: 1, kind: input, shape index: {}]
  %s2 = inlined_call_operand.vmem [shape: f32[12], index: 2, kind: input, shape index: {}]
  %s3 = inlined_call_operand.hbm [shape: f32[2], index: 3, kind: input, shape index: {}]
  %s4 = inlined_call_operand.vmem [shape: f32[12], index: 4, kind: input, shape index: {}]
  %s5 = inlined_call_operand.vmem [shape: f32[2], index: 5, kind: input, shape index: {}]
  %s6 = inlined_call_operand.hbm [shape: bf16[256,512], index: 6, kind: input, shape index: {}]
  %s7 = inlined_call_operand.hbm [shape: bf16[256,512], index: 7, kind: input, shape index: {}]
  %s8 = inlined_call_operand.vmem [shape: f32[1,512], index: 8, kind: input, shape index: {}]
  %s9 = inlined_call_operand.hbm [shape: bf16[512,256], index: 9, kind: input, shape index: {}]
  %s10 = inlined_call_operand.vmem [shape: f32[1,256], index: 10, kind: input, shape index: {}]
  %s11 = inlined_call_operand.vmem [shape: bf16[256,1], index: 11, kind: input, shape index: {}]
  %s12 = inlined_call_operand.<no memory space> [shape: f32[1,1], index: 12, kind: input, shape index: {}]
  %s13 = inlined_call_operand.vmem [shape: f32[32,1], index: 13, kind: output, shape index: {}]
  %s14 = sld [smem:[#allocation0]]
  $region113: #{tpu_custom_call.1} parent=0
    _
  %s16 = ssub.s32 1, %s14
  %s17 = scalar_select 0, %s16, %s14
  %v18 = vstv %s12
  %19 = vst [vmem:[#allocation2] sm:$0x1] %v18
  $region1: #{tpu_custom_call.1} parent=0
    #allocation3 [shape = 'u8[512]{0}', space=smem, size = 0x200, scoped, tag = 'input window, operand 2, single buffered']
    #allocation4 [shape = 's32[2]{0}', space=sflag, size = 0x8, scoped, tag = 'scoped memory for tpu_custom_call.1']
    #allocation5 [shape = 's32[2]{0}', space=sflag, size = 0x8, scoped, tag = 'scoped memory for tpu_custom_call.1']
    #allocation6 [shape = 's32[2]{0}', space=sflag, size = 0x8, scoped, tag = 'scoped memory for tpu_custom_call.1']
    #allocation7 [shape = 'u8[512]{0}', space=smem, size = 0x200, scoped, tag = 'input window, operand 3, single buffered']
    #allocation8 [shape = 'u8[512]{0}', space=smem, size = 0x200, scoped, tag = 'input window, operand 4, single buffered']
    #allocation9 [shape = 's32[1]{0}', space=sflag, size = 0x4, scoped, tag = 'scoped memory for tpu_custom_call.1']
    #allocation10 [shape = 'u8[512]{0}', space=smem, size = 0x200, scoped, tag = 'input window, operand 5, single buffered']
    #allocation11 [shape = 'u8[262144]{0}', space=vmem, size = 0x40000, scoped, tag = 'input window, operand 6, single buffered']
    #allocation12 [shape = 'u8[262144]{0}', space=vmem, size = 0x40000, scoped, tag = 'input window, operand 7, single buffered']
    #allocation13 [shape = 's32[1]{0}', space=sflag, size = 0x4, scoped, tag = 'scoped memory for tpu_custom_call.1']
    #allocation14 [shape = 'u8[262144]{0}', space=vmem, size = 0x40000, scoped, tag = 'input window, operand 9, single buffered']
    %20 = vsyncpa [#allocation6], 0
    %21 = vsyncpa [#allocation5], 0
    %22 = vsyncpa [#allocation9], 0
    %23 = vsyncpa [#allocation4], 0
    %24 = vsyncpa [#allocation13], 0
    loop: start=0, step=1, limit=6
    $region2: #{tpu_custom_call.1} parent=1 // loop_pre_header
      _
    $region3: #{tpu_custom_call.1} parent=1 // loop_header
      %s26 = sphi 0, %s30
      %p27 = scmp.ge.s32.totalorder %s26, 6
      %s36 = sphi 0, %s38
      %s39 = sphi 0, %s36
      %s40 = sphi 0, %s39
      %s56 = sphi 0, %s40
      %s62 = sphi 0, %s64
      %s65 = sphi 0, %s62
      %s66 = sphi 0, %s65
      %s82 = sphi 0, %s66
      %s86 = sphi 0, %s86
      %s88 = sphi 0, %s86
      %s89 = sphi 0, %s88
      %s103 = sphi 0, %s89
      %s107 = sphi 0, %s107
      %s109 = sphi 0, %s107
      %s110 = sphi 0, %s109
      %s124 = sphi 0, %s110
      %s128 = sphi 0, %s128
      %s130 = sphi 0, %s128
      %s131 = sphi 0, %s130
      %s145 = sphi 0, %s131
      %s149 = sphi 0, %s149
      %s151 = sphi 0, %s149
      %s152 = sphi 0, %s151
      %s166 = sphi 0, %s152
      %s170 = sphi 0, %s170
      %s172 = sphi 0, %s170
      %s173 = sphi 0, %s172
      %s187 = sphi 0, %s173
      %s191 = sphi 0, %s191
      %s193 = sphi 0, %s191
      %s194 = sphi 0, %s193
      %s208 = sphi 0, %s194
      %s212 = sphi 0, %s212
      %s214 = sphi 0, %s212
      %s215 = sphi 0, %s214
      %s229 = sphi 0, %s215
      %s233 = sphi 0, %s233
      %s235 = sphi 0, %s233
      %s236 = sphi 0, %s235
      %s250 = sphi 0, %s236
      %s254 = sphi 0, %s254
      %s256 = sphi 0, %s254
      %s257 = sphi 0, %s256
      %s271 = sphi 0, %s257
      %s275 = sphi 0, %s275
      %s277 = sphi 0, %s275
      %s278 = sphi 0, %s277
      %s292 = sphi 0, %s278
      %s296 = sphi 0, %s296
      %s298 = sphi 0, %s296
      %s299 = sphi 0, %s298
      %s313 = sphi 0, %s299
      %s319 = sphi 0, %s321
      %s322 = sphi 0, %s319
      %s323 = sphi 0, %s322
      %s339 = sphi 0, %s323
    $region4: #{tpu_custom_call.1} parent=1 // loop_header_branch
      %29 = sbr.rel (%p27) target = $region8
    $region5: #{tpu_custom_call.1} parent=1 // loop_body
      %s31 = ssub.s32 %s26, 1
      %s32 = ssub.s32 %s26, 2
      %s33 = sadd.s32 %s26, 1
      %s34 = ssub.s32 %s26, %s33
      %p35 = scmp.eq.s32.totalorder %s34, 0
      %s37 = sadd.s32 %s36, 1
      %s38 = scalar_select %p35, %s36, %s37
      %p41 = pneg %p35
      %p42 = scmp.eq.s32.totalorder %s26, 3
      %p43 = por %p41, %p42
      %p44 = scmp.ne.s32.totalorder %s36, %s39
      %p45 = scmp.eq.s32.totalorder %s26, 0
      %p46 = por %p44, %p45
      %p47 = scmp.ne.s32.totalorder %s36, %s39
      %p48 = scmp.eq.s32.totalorder %s31, 3
      %p49 = por %p47, %p48
      %p50 = scmp.ne.s32.totalorder %s39, %s40
      %p51 = scmp.eq.s32.totalorder %s31, 0
      %p52 = por %p50, %p51
      %p53 = scmp.ne.s32.totalorder %s39, %s40
      %p54 = scmp.eq.s32.totalorder %s32, 3
      %p55 = por %p53, %p54
      %p57 = scmp.ne.s32.totalorder %s40, %s56
      %p58 = scmp.eq.s32.totalorder %s32, 0
      %p59 = por %p57, %p58
      %s60 = ssub.s32 %s26, %s33
      %p61 = scmp.eq.s32.totalorder %s60, 0
      %s63 = sadd.s32 %s62, 1
      %s64 = scalar_select %p61, %s62, %s63
      %p67 = pneg %p61
      %p68 = scmp.eq.s32.totalorder %s26, 3
      %p69 = por %p67, %p68
      %p70 = scmp.ne.s32.totalorder %s62, %s65
      %p71 = scmp.eq.s32.totalorder %s26, 0
      %p72 = por %p70, %p71
      %p73 = scmp.ne.s32.totalorder %s62, %s65
      %p74 = scmp.eq.s32.totalorder %s31, 3
      %p75 = por %p73, %p74
      %p76 = scmp.ne.s32.totalorder %s65, %s66
      %p77 = scmp.eq.s32.totalorder %s31, 0
      %p78 = por %p76, %p77
      %p79 = scmp.ne.s32.totalorder %s65, %s66
      %p80 = scmp.eq.s32.totalorder %s32, 3
      %p81 = por %p79, %p80
      %p83 = scmp.ne.s32.totalorder %s66, %s82
      %p84 = scmp.eq.s32.totalorder %s32, 0
      %p85 = por %p83, %p84
      %s87 = sadd.s32 %s86, 1
      %p90 = scmp.eq.s32.totalorder %s26, 3
      %p91 = scmp.ne.s32.totalorder %s86, %s88
      %p92 = scmp.eq.s32.totalorder %s26, 0
      %p93 = por %p91, %p92
      %p94 = scmp.ne.s32.totalorder %s86, %s88
      %p95 = scmp.eq.s32.totalorder %s31, 3
      %p96 = por %p94, %p95
      %p97 = scmp.ne.s32.totalorder %s88, %s89
      %p98 = scmp.eq.s32.totalorder %s31, 0
      %p99 = por %p97, %p98
      %p100 = scmp.ne.s32.totalorder %s88, %s89
      %p101 = scmp.eq.s32.totalorder %s32, 3
      %p102 = por %p100, %p101
      %p104 = scmp.ne.s32.totalorder %s89, %s103
      %p105 = scmp.eq.s32.totalorder %s32, 0
      %p106 = por %p104, %p105
      %s108 = sadd.s32 %s107, 1
      %p111 = scmp.eq.s32.totalorder %s26, 3
      %p112 = scmp.ne.s32.totalorder %s107, %s109
      %p113 = scmp.eq.s32.totalorder %s26, 0
      %p114 = por %p112, %p113
      %p115 = scmp.ne.s32.totalorder %s107, %s109
      %p116 = scmp.eq.s32.totalorder %s31, 3
      %p117 = por %p115, %p116
      %p118 = scmp.ne.s32.totalorder %s109, %s110
      %p119 = scmp.eq.s32.totalorder %s31, 0
      %p120 = por %p118, %p119
      %p121 = scmp.ne.s32.totalorder %s109, %s110
      %p122 = scmp.eq.s32.totalorder %s32, 3
      %p123 = por %p121, %p122
      %p125 = scmp.ne.s32.totalorder %s110, %s124
      %p126 = scmp.eq.s32.totalorder %s32, 0
      %p127 = por %p125, %p126
      %s129 = sadd.s32 %s128, 1
      %p132 = scmp.eq.s32.totalorder %s26, 3
      %p133 = scmp.ne.s32.totalorder %s128, %s130
      %p134 = scmp.eq.s32.totalorder %s26, 0
      %p135 = por %p133, %p134
      %p136 = scmp.ne.s32.totalorder %s128, %s130
      %p137 = scmp.eq.s32.totalorder %s31, 3
      %p138 = por %p136, %p137
      %p139 = scmp.ne.s32.totalorder %s130, %s131
      %p140 = scmp.eq.s32.totalorder %s31, 0
      %p141 = por %p139, %p140
      %p142 = scmp.ne.s32.totalorder %s130, %s131
      %p143 = scmp.eq.s32.totalorder %s32, 3
      %p144 = por %p142, %p143
      %p146 = scmp.ne.s32.totalorder %s131, %s145
      %p147 = scmp.eq.s32.totalorder %s32, 0
      %p148 = por %p146, %p147
      %s150 = sadd.s32 %s149, 1
      %p153 = scmp.eq.s32.totalorder %s26, 3
      %p154 = scmp.ne.s32.totalorder %s149, %s151
      %p155 = scmp.eq.s32.totalorder %s26, 0
      %p156 = por %p154, %p155
      %p157 = scmp.ne.s32.totalorder %s149, %s151
      %p158 = scmp.eq.s32.totalorder %s31, 3
      %p159 = por %p157, %p158
      %p160 = scmp.ne.s32.totalorder %s151, %s152
      %p161 = scmp.eq.s32.totalorder %s31, 0
      %p162 = por %p160, %p161
      %p163 = scmp.ne.s32.totalorder %s151, %s152
      %p164 = scmp.eq.s32.totalorder %s32, 3
      %p165 = por %p163, %p164
      %p167 = scmp.ne.s32.totalorder %s152, %s166
      %p168 = scmp.eq.s32.totalorder %s32, 0
      %p169 = por %p167, %p168
      %s171 = sadd.s32 %s170, 1
      %p174 = scmp.eq.s32.totalorder %s26, 3
      %p175 = scmp.ne.s32.totalorder %s170, %s172
      %p176 = scmp.eq.s32.totalorder %s26, 0
      %p177 = por %p175, %p176
      %p178 = scmp.ne.s32.totalorder %s170, %s172
      %p179 = scmp.eq.s32.totalorder %s31, 3
      %p180 = por %p178, %p179
      %p181 = scmp.ne.s32.totalorder %s172, %s173
      %p182 = scmp.eq.s32.totalorder %s31, 0
      %p183 = por %p181, %p182
      %p184 = scmp.ne.s32.totalorder %s172, %s173
      %p185 = scmp.eq.s32.totalorder %s32, 3
      %p186 = por %p184, %p185
      %p188 = scmp.ne.s32.totalorder %s173, %s187
      %p189 = scmp.eq.s32.totalorder %s32, 0
      %p190 = por %p188, %p189
      %s192 = sadd.s32 %s191, 1
      %p195 = scmp.eq.s32.totalorder %s26, 3
      %p196 = scmp.ne.s32.totalorder %s191, %s193
      %p197 = scmp.eq.s32.totalorder %s26, 0
      %p198 = por %p196, %p197
      %p199 = scmp.ne.s32.totalorder %s191, %s193
      %p200 = scmp.eq.s32.totalorder %s31, 3
      %p201 = por %p199, %p200
      %p202 = scmp.ne.s32.totalorder %s193, %s194
      %p203 = scmp.eq.s32.totalorder %s31, 0
      %p204 = por %p202, %p203
      %p205 = scmp.ne.s32.totalorder %s193, %s194
      %p206 = scmp.eq.s32.totalorder %s32, 3
      %p207 = por %p205, %p206
      %p209 = scmp.ne.s32.totalorder %s194, %s208
      %p210 = scmp.eq.s32.totalorder %s32, 0
      %p211 = por %p209, %p210
      %s213 = sadd.s32 %s212, 1
      %p216 = scmp.eq.s32.totalorder %s26, 3
      %p217 = scmp.ne.s32.totalorder %s212, %s214
      %p218 = scmp.eq.s32.totalorder %s26, 0
      %p219 = por %p217, %p218
      %p220 = scmp.ne.s32.totalorder %s212, %s214
      %p221 = scmp.eq.s32.totalorder %s31, 3
      %p222 = por %p220, %p221
      %p223 = scmp.ne.s32.totalorder %s214, %s215
      %p224 = scmp.eq.s32.totalorder %s31, 0
      %p225 = por %p223, %p224
      %p226 = scmp.ne.s32.totalorder %s214, %s215
      %p227 = scmp.eq.s32.totalorder %s32, 3
      %p228 = por %p226, %p227
      %p230 = scmp.ne.s32.totalorder %s215, %s229
      %p231 = scmp.eq.s32.totalorder %s32, 0
      %p232 = por %p230, %p231
      %s234 = sadd.s32 %s233, 1
      %p237 = scmp.eq.s32.totalorder %s26, 3
      %p238 = scmp.ne.s32.totalorder %s233, %s235
      %p239 = scmp.eq.s32.totalorder %s26, 0
      %p240 = por %p238, %p239
      %p241 = scmp.ne.s32.totalorder %s233, %s235
      %p242 = scmp.eq.s32.totalorder %s31, 3
      %p243 = por %p241, %p242
      %p244 = scmp.ne.s32.totalorder %s235, %s236
      %p245 = scmp.eq.s32.totalorder %s31, 0
      %p246 = por %p244, %p245
      %p247 = scmp.ne.s32.totalorder %s235, %s236
      %p248 = scmp.eq.s32.totalorder %s32, 3
      %p249 = por %p247, %p248
      %p251 = scmp.ne.s32.totalorder %s236, %s250
      %p252 = scmp.eq.s32.totalorder %s32, 0
      %p253 = por %p251, %p252
      %s255 = sadd.s32 %s254, 1
      %p258 = scmp.eq.s32.totalorder %s26, 3
      %p259 = scmp.ne.s32.totalorder %s254, %s256
      %p260 = scmp.eq.s32.totalorder %s26, 0
      %p261 = por %p259, %p260
      %p262 = scmp.ne.s32.totalorder %s254, %s256
      %p263 = scmp.eq.s32.totalorder %s31, 3
      %p264 = por %p262, %p263
      %p265 = scmp.ne.s32.totalorder %s256, %s257
      %p266 = scmp.eq.s32.totalorder %s31, 0
      %p267 = por %p265, %p266
      %p268 = scmp.ne.s32.totalorder %s256, %s257
      %p269 = scmp.eq.s32.totalorder %s32, 3
      %p270 = por %p268, %p269
      %p272 = scmp.ne.s32.totalorder %s257, %s271
      %p273 = scmp.eq.s32.totalorder %s32, 0
      %p274 = por %p272, %p273
      %s276 = sadd.s32 %s275, 1
      %p279 = scmp.eq.s32.totalorder %s26, 3
      %p280 = scmp.ne.s32.totalorder %s275, %s277
      %p281 = scmp.eq.s32.totalorder %s26, 0
      %p282 = por %p280, %p281
      %p283 = scmp.ne.s32.totalorder %s275, %s277
      %p284 = scmp.eq.s32.totalorder %s31, 3
      %p285 = por %p283, %p284
      %p286 = scmp.ne.s32.totalorder %s277, %s278
      %p287 = scmp.eq.s32.totalorder %s31, 0
      %p288 = por %p286, %p287
      %p289 = scmp.ne.s32.totalorder %s277, %s278
      %p290 = scmp.eq.s32.totalorder %s32, 3
      %p291 = por %p289, %p290
      %p293 = scmp.ne.s32.totalorder %s278, %s292
      %p294 = scmp.eq.s32.totalorder %s32, 0
      %p295 = por %p293, %p294
      %s297 = sadd.s32 %s296, 1
      %p300 = scmp.eq.s32.totalorder %s26, 3
      %p301 = scmp.ne.s32.totalorder %s296, %s298
      %p302 = scmp.eq.s32.totalorder %s26, 0
      %p303 = por %p301, %p302
      %p304 = scmp.ne.s32.totalorder %s296, %s298
      %p305 = scmp.eq.s32.totalorder %s31, 3
      %p306 = por %p304, %p305
      %p307 = scmp.ne.s32.totalorder %s298, %s299
      %p308 = scmp.eq.s32.totalorder %s31, 0
      %p309 = por %p307, %p308
      %p310 = scmp.ne.s32.totalorder %s298, %s299
      %p311 = scmp.eq.s32.totalorder %s32, 3
      %p312 = por %p310, %p311
      %p314 = scmp.ne.s32.totalorder %s299, %s313
      %p315 = scmp.eq.s32.totalorder %s32, 0
      %p316 = por %p314, %p315
      %s317 = ssub.s32 %s26, %s33
      %p318 = scmp.eq.s32.totalorder %s317, 0
      %s320 = sadd.s32 %s319, 1
      %s321 = scalar_select %p318, %s319, %s320
      %p324 = pneg %p318
      %p325 = scmp.eq.s32.totalorder %s26, 3
      %p326 = por %p324, %p325
      %p327 = scmp.ne.s32.totalorder %s319, %s322
      %p328 = scmp.eq.s32.totalorder %s26, 0
      %p329 = por %p327, %p328
      %p330 = scmp.ne.s32.totalorder %s319, %s322
      %p331 = scmp.eq.s32.totalorder %s31, 3
      %p332 = por %p330, %p331
      %p333 = scmp.ne.s32.totalorder %s322, %s323
      %p334 = scmp.eq.s32.totalorder %s31, 0
      %p335 = por %p333, %p334
      %p336 = scmp.ne.s32.totalorder %s322, %s323
      %p337 = scmp.eq.s32.totalorder %s32, 3
      %p338 = por %p336, %p337
      %p340 = scmp.ne.s32.totalorder %s323, %s339
      %p341 = scmp.eq.s32.totalorder %s32, 0
      %p342 = por %p340, %p341
      %p343 = scmp.le.s32.totalorder 1, %s26
      %p344 = scmp.lt.s32.totalorder %s26, 5
      %p345 = pnand %p343, %p344
      %p346 = pneg %p345
      // Predicated region
      $region9: #{tpu_custom_call.1} parent=5 // pred_check
        _
      $region10: #{tpu_custom_call.1} parent=5 // pred_check_branch
        %348 = sbr.rel (%p345) target = $region12
      $region11: #{tpu_custom_call.1} parent=5 // pred_region
        %s349 = ssub.s32 %s26, 1
        // Predicated region
        $region13: #{tpu_custom_call.1} parent=11 // pred_check
          %p350 = pneg %p99
        $region14: #{tpu_custom_call.1} parent=11 // pred_check_branch
          %352 = sbr.rel (%p350) target = $region16
        $region15: #{tpu_custom_call.1} parent=11 // pred_region
          %s354 = ssub.s32 16, 16
          %355 = vsyncadd [#allocation6], %s354
          %s357 = sshll.u32 %s2, 4
          %s358 = int_to_ptr.vmem [resolvable:$true] %s357
          %360 = dma.vmem_to_smem %s358, 16, [#allocation3], [#allocation6]
        $region16: #{tpu_custom_call.1} parent=11 // pred_fallthru
          _
        // Predicated region
        $region17: #{tpu_custom_call.1} parent=11 // pred_check
          %p361 = pneg %p120
        $region18: #{tpu_custom_call.1} parent=11 // pred_check_branch
          %363 = sbr.rel (%p361) target = $region20
        $region19: #{tpu_custom_call.1} parent=11 // pred_region
          %s365 = ssub.s32 16, 16
          %366 = vsyncadd [#allocation5], %s365
          %369 = dma.hbm_to_smem %s3, 16, [#allocation7], [#allocation5]
        $region20: #{tpu_custom_call.1} parent=11 // pred_fallthru
          _
        // Predicated region
        $region21: #{tpu_custom_call.1} parent=11 // pred_check
          %p370 = pneg %p141
        $region22: #{tpu_custom_call.1} parent=11 // pred_check_branch
          %372 = sbr.rel (%p370) target = $region24
        $region23: #{tpu_custom_call.1} parent=11 // pred_region
          %s374 = ssub.s32 16, 16
          %375 = vsyncadd [#allocation9], %s374
          %s377 = sshll.u32 %s4, 4
          %s378 = int_to_ptr.vmem [resolvable:$true] %s377
          %380 = dma.vmem_to_smem %s378, 16, [#allocation8], [#allocation9]
        $region24: #{tpu_custom_call.1} parent=11 // pred_fallthru
          _
        // Predicated region
        $region25: #{tpu_custom_call.1} parent=11 // pred_check
          %p381 = pneg %p162
        $region26: #{tpu_custom_call.1} parent=11 // pred_check_branch
          %383 = sbr.rel (%p381) target = $region28
        $region27: #{tpu_custom_call.1} parent=11 // pred_region
          %s385 = ssub.s32 16, 16
          %386 = vsyncadd [#allocation9], %s385
          %s388 = sshll.u32 %s5, 4
          %s389 = int_to_ptr.vmem [resolvable:$true] %s388
          %391 = dma.vmem_to_smem %s389, 16, [#allocation10], [#allocation9]
        $region28: #{tpu_custom_call.1} parent=11 // pred_fallthru
          _
        // Predicated region
        $region29: #{tpu_custom_call.1} parent=11 // pred_check
          %p392 = pneg %p183
        $region30: #{tpu_custom_call.1} parent=11 // pred_check_branch
          %394 = sbr.rel (%p392) target = $region32
        $region31: #{tpu_custom_call.1} parent=11 // pred_region
          %s396 = ssub.s32 8192, 8192
          %397 = vsyncadd [#allocation4], %s396
          %s398 = sshll.u32 [#allocation11], 4
          %s399 = int_to_ptr.vmem [resolvable:$true] %s398
          %404 = dma.hbm_to_vmem [thread:$0]  %s6, 8192, %s399, [#allocation4], 256, 256, 16
        $region32: #{tpu_custom_call.1} parent=11 // pred_fallthru
          _
        // Predicated region
        $region33: #{tpu_custom_call.1} parent=11 // pred_check
          %p405 = pneg %p204
        $region34: #{tpu_custom_call.1} parent=11 // pred_check_branch
          %407 = sbr.rel (%p405) target = $region36
        $region35: #{tpu_custom_call.1} parent=11 // pred_region
          %s409 = ssub.s32 8192, 8192
          %410 = vsyncadd [#allocation13], %s409
          %s411 = sshll.u32 [#allocation12], 4
          %s412 = int_to_ptr.vmem [resolvable:$true] %s411
          %417 = dma.hbm_to_vmem [thread:$0]  %s7, 8192, %s412, [#allocation13], 256, 256, 16
        $region36: #{tpu_custom_call.1} parent=11 // pred_fallthru
          _
        // Predicated region
        $region37: #{tpu_custom_call.1} parent=11 // pred_check
          %p418 = pneg %p225
        $region38: #{tpu_custom_call.1} parent=11 // pred_check_branch
          %420 = sbr.rel (%p418) target = $region40
        $region39: #{tpu_custom_call.1} parent=11 // pred_region
          _
        $region40: #{tpu_custom_call.1} parent=11 // pred_fallthru
          _
        // Predicated region
        $region41: #{tpu_custom_call.1} parent=11 // pred_check
          %p421 = pneg %p246
        $region42: #{tpu_custom_call.1} parent=11 // pred_check_branch
          %423 = sbr.rel (%p421) target = $region44
        $region43: #{tpu_custom_call.1} parent=11 // pred_region
          %s425 = ssub.s32 8192, 8192
          %426 = vsyncadd [#allocation13], %s425
          %s427 = sshll.u32 [#allocation14], 4
          %s428 = int_to_ptr.vmem [resolvable:$true] %s427
          %433 = dma.hbm_to_vmem [thread:$0]  %s9, 8192, %s428, [#allocation13], 128, 128, 8
        $region44: #{tpu_custom_call.1} parent=11 // pred_fallthru
          _
        // Predicated region
        $region45: #{tpu_custom_call.1} parent=11 // pred_check
          %p434 = pneg %p267
        $region46: #{tpu_custom_call.1} parent=11 // pred_check_branch
          %436 = sbr.rel (%p434) target = $region48
        $region47: #{tpu_custom_call.1} parent=11 // pred_region
          _
        $region48: #{tpu_custom_call.1} parent=11 // pred_fallthru
          _
        // Predicated region
        $region49: #{tpu_custom_call.1} parent=11 // pred_check
          %p437 = pneg %p288
        $region50: #{tpu_custom_call.1} parent=11 // pred_check_branch
          %439 = sbr.rel (%p437) target = $region52
        $region51: #{tpu_custom_call.1} parent=11 // pred_region
          _
        $region52: #{tpu_custom_call.1} parent=11 // pred_fallthru
          _
        // Predicated region
        $region53: #{tpu_custom_call.1} parent=11 // pred_check
          %p440 = pneg %p309
        $region54: #{tpu_custom_call.1} parent=11 // pred_check_branch
          %442 = sbr.rel (%p440) target = $region56
        $region55: #{tpu_custom_call.1} parent=11 // pred_region
          _
        $region56: #{tpu_custom_call.1} parent=11 // pred_fallthru
          _
      $region12: #{tpu_custom_call.1} parent=5 // pred_fallthru
        _
      %p443 = scmp.lt.s32.totalorder %s26, 4
      // Predicated region
      $region57: #{tpu_custom_call.1} parent=5 // pred_check
        %p444 = pneg %p443
      $region58: #{tpu_custom_call.1} parent=5 // pred_check_branch
        %446 = sbr.rel (%p444) target = $region60
      $region59: #{tpu_custom_call.1} parent=5 // pred_region
        // Predicated region
        $region61: #{tpu_custom_call.1} parent=59 // pred_check
          %p447 = pneg %p46
        $region62: #{tpu_custom_call.1} parent=59 // pred_check_branch
          %449 = sbr.rel (%p447) target = $region64
        $region63: #{tpu_custom_call.1} parent=59 // pred_region
          %p450 = scmp.lt.s32.totalorder %s26, 3
          %s451 = scalar_select %p450, %s26, 3
          %s452 = smul.addr %s451, 2
          %s453 = smul.addr %s452, 8
          %s454 = scalar_lea.vmem %s0, %s453
        $region64: #{tpu_custom_call.1} parent=59 // pred_fallthru
          _
        // Predicated region
        $region65: #{tpu_custom_call.1} parent=59 // pred_check
          %p455 = pneg %p72
        $region66: #{tpu_custom_call.1} parent=59 // pred_check_branch
          %457 = sbr.rel (%p455) target = $region68
        $region67: #{tpu_custom_call.1} parent=59 // pred_region
          %p458 = scmp.lt.s32.totalorder %s26, 3
          %s459 = scalar_select %p458, %s26, 3
          %s460 = smul.addr %s459, 2
          %s461 = smul.addr %s460, 8
          %s462 = scalar_lea.vmem %s1, %s461
        $region68: #{tpu_custom_call.1} parent=59 // pred_fallthru
          _
      $region60: #{tpu_custom_call.1} parent=5 // pred_fallthru
        _
      %p463 = scmp.le.s32.totalorder 1, %s26
      %p464 = scmp.lt.s32.totalorder %s26, 5
      %p465 = pnand %p463, %p464
      %p466 = pneg %p465
      // Predicated region
      $region69: #{tpu_custom_call.1} parent=5 // pred_check
        _
      $region70: #{tpu_custom_call.1} parent=5 // pred_check_branch
        %468 = sbr.rel (%p465) target = $region72
      $region71: #{tpu_custom_call.1} parent=5 // pred_region
        %s469 = ssub.s32 %s26, 1
        // Predicated region
        $region73: #{tpu_custom_call.1} parent=71 // pred_check
          %p470 = pneg %p99
        $region74: #{tpu_custom_call.1} parent=71 // pred_check_branch
          %472 = sbr.rel (%p470) target = $region76
        $region75: #{tpu_custom_call.1} parent=71 // pred_region
          %473 = dma.done [#allocation6], 16
        $region76: #{tpu_custom_call.1} parent=71 // pred_fallthru
          _
        // Predicated region
        $region77: #{tpu_custom_call.1} parent=71 // pred_check
          %p474 = pneg %p120
        $region78: #{tpu_custom_call.1} parent=71 // pred_check_branch
          %476 = sbr.rel (%p474) target = $region80
        $region79: #{tpu_custom_call.1} parent=71 // pred_region
          %477 = dma.done [#allocation5], 16
        $region80: #{tpu_custom_call.1} parent=71 // pred_fallthru
          _
        // Predicated region
        $region81: #{tpu_custom_call.1} parent=71 // pred_check
          %p478 = pneg %p141
        $region82: #{tpu_custom_call.1} parent=71 // pred_check_branch
          %480 = sbr.rel (%p478) target = $region84
        $region83: #{tpu_custom_call.1} parent=71 // pred_region
          %481 = dma.done [#allocation9], 16
        $region84: #{tpu_custom_call.1} parent=71 // pred_fallthru
          _
        // Predicated region
        $region85: #{tpu_custom_call.1} parent=71 // pred_check
          %p482 = pneg %p162
        $region86: #{tpu_custom_call.1} parent=71 // pred_check_branch
          %484 = sbr.rel (%p482) target = $region88
        $region87: #{tpu_custom_call.1} parent=71 // pred_region
          %485 = dma.done [#allocation9], 16
        $region88: #{tpu_custom_call.1} parent=71 // pred_fallthru
          _
        // Predicated region
        $region89: #{tpu_custom_call.1} parent=71 // pred_check
          %p486 = pneg %p183
        $region90: #{tpu_custom_call.1} parent=71 // pred_check_branch
          %488 = sbr.rel (%p486) target = $region92
        $region91: #{tpu_custom_call.1} parent=71 // pred_region
          %489 = dma.done [#allocation4], 8192
        $region92: #{tpu_custom_call.1} parent=71 // pred_fallthru
          _
        // Predicated region
        $region93: #{tpu_custom_call.1} parent=71 // pred_check
          %p490 = pneg %p204
        $region94: #{tpu_custom_call.1} parent=71 // pred_check_branch
          %492 = sbr.rel (%p490) target = $region96
        $region95: #{tpu_custom_call.1} parent=71 // pred_region
          %493 = dma.done [#allocation13], 8192
        $region96: #{tpu_custom_call.1} parent=71 // pred_fallthru
          _
        // Predicated region
        $region97: #{tpu_custom_call.1} parent=71 // pred_check
          %p494 = pneg %p246
        $region98: #{tpu_custom_call.1} parent=71 // pred_check_branch
          %496 = sbr.rel (%p494) target = $region100
        $region99: #{tpu_custom_call.1} parent=71 // pred_region
          %497 = dma.done [#allocation13], 8192
        $region100: #{tpu_custom_call.1} parent=71 // pred_fallthru
          _
        %498 = sfence
        %p499 = scmp.lt.s32.totalorder %s31, 3
        %s500 = scalar_select %p499, %s31, 3
        %s501 = smul.addr %s500, 2
        %s502 = smul.addr %s501, 8
        %s503 = scalar_lea.vmem %s0, %s502
        %p504 = pneg %p52
        %p505 = pneg %p49
        %p506 = scmp.lt.s32.totalorder %s31, 3
        %s507 = scalar_select %p506, %s31, 3
        %s508 = smul.addr %s507, 2
        %s509 = smul.addr %s508, 8
        %s510 = scalar_lea.vmem %s1, %s509
        %p511 = pneg %p78
        %p512 = pneg %p75
        %p513 = pneg %p99
        %p514 = pneg %p96
        %p515 = pneg %p120
        %p516 = pneg %p117
        %p517 = pneg %p141
        %p518 = pneg %p138
        %p519 = pneg %p162
        %p520 = pneg %p159
        %p521 = pneg %p183
        %p522 = pneg %p180
        %p523 = pneg %p204
        %p524 = pneg %p201
        %p525 = pneg %p225
        %p526 = pneg %p222
        %p527 = pneg %p246
        %p528 = pneg %p243
        %p529 = pneg %p267
        %p530 = pneg %p264
        %p531 = pneg %p288
        %p532 = pneg %p285
        %p533 = pneg %p309
        %p534 = pneg %p306
        %p535 = pneg %p335
        %p536 = pneg %p332
        %p537 = scmp.lt.s32.totalorder %s31, 3
        %s538 = scalar_select %p537, %s31, 3
        %s539 = smul.addr %s538, 8
        %s540 = scalar_lea.vmem %s13, %s539
        %p541 = scmp.lt.s32.totalorder %s31, 3
        %s542 = scalar_select %p541, %s31, 3
        %s543 = smul.addr %s542, 2
        %s544 = smul.addr %s543, 8
        %s545 = scalar_lea.vmem %s0, %s544
        %p546 = scmp.lt.s32.totalorder %s31, 3
        %s547 = scalar_select %p546, %s31, 3
        %s548 = smul.addr %s547, 2
        %s549 = smul.addr %s548, 8
        %s550 = scalar_lea.vmem %s1, %s549
        %p551 = scmp.lt.s32.totalorder %s31, 3
        %s552 = scalar_select %p551, %s31, 3
        %s553 = smul.addr %s552, 8
        %s554 = scalar_lea.vmem %s13, %s553
        %v556 = vld [vmem:[%s545] sm:$0xff]
        %v557 = vld [vmem:[%s545 + $0x8] sm:$0xff]
        %v558 = vld [vmem:[%s550] sm:$0xff]
        %v559 = vld [vmem:[%s550 + $0x8] sm:$0xff]
        %v560 = vlaneseq
        %v561 = vand.u32 %v560, 127
        %v562 = vadd.s32 %v561, 128
        %vm563 = vcmp.lt.s32.totalorder %v561, 150
        %vm564 = vcmp.lt.s32.totalorder %v562, 150
        %s565 = sld [smem:[#allocation3]]
        %s566 = sld [smem:[#allocation3 + $0x1]]
        %s567 = sld [smem:[#allocation3 + $0x2]]
        %s568 = sld [smem:[#allocation3 + $0x3]]
        %s569 = sld [smem:[#allocation3 + $0x4]]
        %s570 = sld [smem:[#allocation3 + $0x5]]
        %s571 = sld [smem:[#allocation3 + $0x6]]
        %s572 = sld [smem:[#allocation3 + $0x7]]
        %s573 = sld [smem:[#allocation3 + $0x8]]
        %s574 = sld [smem:[#allocation3 + $0x9]]
        %s575 = sld [smem:[#allocation3 + $0xa]]
        %s576 = sld [smem:[#allocation3 + $0xb]]
        %s577 = sld [smem:[#allocation7]]
        %s578 = sld [smem:[#allocation7 + $0x1]]
        %581 = vrot.lane.b32.xlu0 %v556, 1
        %v582 = vpop.permute.xlu0 %581
        %583 = vrot.lane.b32.xlu0 %v557, 1
        %v584 = vpop.permute.xlu0 %583
        %vm585 = vcmask 7168
        %v586 = vsel %vm585, %v582, %v584
        %v589 = vsel %vm585, 0.0, %v582
        %590 = vrot.lane.b32.xlu0 %v556, 127
        %v591 = vpop.permute.xlu0 %590
        %592 = vrot.lane.b32.xlu0 %v557, 127
        %v593 = vpop.permute.xlu0 %592
        %vm594 = vcmask 1039360
        %v595 = vsel %vm594, %v591, %v593
        %v598 = vsel %vm594, %v593, 0.0
        %601 = vrot.lane.b32.xlu0 %v558, 1
        %v602 = vpop.permute.xlu0 %601
        %603 = vrot.lane.b32.xlu0 %v559, 1
        %v604 = vpop.permute.xlu0 %603
        %v605 = vsel %vm585, %v602, %v604
        %v608 = vsel %vm585, 0.0, %v602
        %609 = vrot.lane.b32.xlu0 %v558, 127
        %v610 = vpop.permute.xlu0 %609
        %611 = vrot.lane.b32.xlu0 %v559, 127
        %v612 = vpop.permute.xlu0 %611
        %v613 = vsel %vm594, %v610, %v612
        %v616 = vsel %vm594, %v612, 0.0
        %v617 = vstv %s565
        %v618 = vmul.f32 %v617, %v589
        %v619 = vmul.f32 %v617, %v586
        %v620 = vstv %s566
        %v621 = vmul.f32 %v620, %v556
        %v622 = vmul.f32 %v620, %v557
        %v623 = vadd.f32 %v618, %v621
        %v624 = vadd.f32 %v619, %v622
        %v625 = vstv %s567
        %v626 = vmul.f32 %v625, %v595
        %v627 = vmul.f32 %v625, %v598
        %v628 = vadd.f32 %v623, %v626
        %v629 = vadd.f32 %v624, %v627
        %v630 = vstv %s568
        %v631 = vmul.f32 %v630, %v608
        %v632 = vmul.f32 %v630, %v605
        %v633 = vadd.f32 %v628, %v631
        %v634 = vadd.f32 %v629, %v632
        %v635 = vstv %s569
        %v636 = vmul.f32 %v635, %v558
        %v637 = vmul.f32 %v635, %v559
        %v638 = vadd.f32 %v633, %v636
        %v639 = vadd.f32 %v634, %v637
        %v640 = vstv %s570
        %v641 = vmul.f32 %v640, %v613
        %v642 = vmul.f32 %v640, %v616
        %v643 = vadd.f32 %v638, %v641
        %v644 = vadd.f32 %v639, %v642
        %v645 = vstv %s577
        %v646 = vadd.f32 %v643, %v645
        %v647 = vadd.f32 %v644, %v645
        %v648 = vmax.f32 %v646, 0.0
        %v649 = vmax.f32 %v647, 0.0
        %v650 = vstv %s571
        %v651 = vmul.f32 %v650, %v589
        %v652 = vmul.f32 %v650, %v586
        %v653 = vstv %s572
        %v654 = vmul.f32 %v653, %v556
        %v655 = vmul.f32 %v653, %v557
        %v656 = vadd.f32 %v651, %v654
        %v657 = vadd.f32 %v652, %v655
        %v658 = vstv %s573
        %v659 = vmul.f32 %v658, %v595
        %v660 = vmul.f32 %v658, %v598
        %v661 = vadd.f32 %v656, %v659
        %v662 = vadd.f32 %v657, %v660
        %v663 = vstv %s574
        %v664 = vmul.f32 %v663, %v608
        %v665 = vmul.f32 %v663, %v605
        %v666 = vadd.f32 %v661, %v664
        %v667 = vadd.f32 %v662, %v665
        %v668 = vstv %s575
        %v669 = vmul.f32 %v668, %v558
        %v670 = vmul.f32 %v668, %v559
        %v671 = vadd.f32 %v666, %v669
        %v672 = vadd.f32 %v667, %v670
        %v673 = vstv %s576
        %v674 = vmul.f32 %v673, %v613
        %v675 = vmul.f32 %v673, %v616
        %v676 = vadd.f32 %v671, %v674
        %v677 = vadd.f32 %v672, %v675
        %v678 = vstv %s578
        %v679 = vadd.f32 %v676, %v678
        %v680 = vadd.f32 %v677, %v678
        %v681 = vmax.f32 %v679, 0.0
        %v682 = vmax.f32 %v680, 0.0
        %v683 = vsel %vm563, %v648, 0.0
        %v684 = vsel %vm564, %v649, 0.0
        %v685 = vsel %vm563, %v681, 0.0
        %v686 = vsel %vm564, %v682, 0.0
        %s687 = sld [smem:[#allocation8]]
        %s688 = sld [smem:[#allocation8 + $0x1]]
        %s689 = sld [smem:[#allocation8 + $0x2]]
        %s690 = sld [smem:[#allocation8 + $0x3]]
        %s691 = sld [smem:[#allocation8 + $0x4]]
        %s692 = sld [smem:[#allocation8 + $0x5]]
        %s693 = sld [smem:[#allocation8 + $0x6]]
        %s694 = sld [smem:[#allocation8 + $0x7]]
        %s695 = sld [smem:[#allocation8 + $0x8]]
        %s696 = sld [smem:[#allocation8 + $0x9]]
        %s697 = sld [smem:[#allocation8 + $0xa]]
        %s698 = sld [smem:[#allocation8 + $0xb]]
        %s699 = sld [smem:[#allocation10]]
        %s700 = sld [smem:[#allocation10 + $0x1]]
        %703 = vrot.lane.b32.xlu0 %v683, 1
        %v704 = vpop.permute.xlu0 %703
        %705 = vrot.lane.b32.xlu0 %v684, 1
        %v706 = vpop.permute.xlu0 %705
        %v707 = vsel %vm585, %v704, %v706
        %v710 = vsel %vm585, 0.0, %v704
        %711 = vrot.lane.b32.xlu0 %v683, 127
        %v712 = vpop.permute.xlu0 %711
        %713 = vrot.lane.b32.xlu0 %v684, 127
        %v714 = vpop.permute.xlu0 %713
        %v715 = vsel %vm594, %v712, %v714
        %v718 = vsel %vm594, %v714, 0.0
        %721 = vrot.lane.b32.xlu0 %v685, 1
        %v722 = vpop.permute.xlu0 %721
        %723 = vrot.lane.b32.xlu0 %v686, 1
        %v724 = vpop.permute.xlu0 %723
        %v725 = vsel %vm585, %v722, %v724
        %v728 = vsel %vm585, 0.0, %v722
        %729 = vrot.lane.b32.xlu0 %v685, 127
        %v730 = vpop.permute.xlu0 %729
        %731 = vrot.lane.b32.xlu0 %v686, 127
        %v732 = vpop.permute.xlu0 %731
        %v733 = vsel %vm594, %v730, %v732
        %v736 = vsel %vm594, %v732, 0.0
        %v737 = vstv %s687
        %v738 = vmul.f32 %v737, %v710
        %v739 = vmul.f32 %v737, %v707
        %v740 = vstv %s688
        %v741 = vmul.f32 %v740, %v683
        %v742 = vmul.f32 %v740, %v684
        %v743 = vadd.f32 %v738, %v741
        %v744 = vadd.f32 %v739, %v742
        %v745 = vstv %s689
        %v746 = vmul.f32 %v745, %v715
        %v747 = vmul.f32 %v745, %v718
        %v748 = vadd.f32 %v743, %v746
        %v749 = vadd.f32 %v744, %v747
        %v750 = vstv %s690
        %v751 = vmul.f32 %v750, %v728
        %v752 = vmul.f32 %v750, %v725
        %v753 = vadd.f32 %v748, %v751
        %v754 = vadd.f32 %v749, %v752
        %v755 = vstv %s691
        %v756 = vmul.f32 %v755, %v685
        %v757 = vmul.f32 %v755, %v686
        %v758 = vadd.f32 %v753, %v756
        %v759 = vadd.f32 %v754, %v757
        %v760 = vstv %s692
        %v761 = vmul.f32 %v760, %v733
        %v762 = vmul.f32 %v760, %v736
        %v763 = vadd.f32 %v758, %v761
        %v764 = vadd.f32 %v759, %v762
        %v765 = vstv %s699
        %v766 = vadd.f32 %v763, %v765
        %v767 = vadd.f32 %v764, %v765
        %v768 = vmax.f32 %v766, 0.0
        %v769 = vmax.f32 %v767, 0.0
        %v770 = vstv %s693
        %v771 = vmul.f32 %v770, %v710
        %v772 = vmul.f32 %v770, %v707
        %v773 = vstv %s694
        %v774 = vmul.f32 %v773, %v683
        %v775 = vmul.f32 %v773, %v684
        %v776 = vadd.f32 %v771, %v774
        %v777 = vadd.f32 %v772, %v775
        %v778 = vstv %s695
        %v779 = vmul.f32 %v778, %v715
        %v780 = vmul.f32 %v778, %v718
        %v781 = vadd.f32 %v776, %v779
        %v782 = vadd.f32 %v777, %v780
        %v783 = vstv %s696
        %v784 = vmul.f32 %v783, %v728
        %v785 = vmul.f32 %v783, %v725
        %v786 = vadd.f32 %v781, %v784
        %v787 = vadd.f32 %v782, %v785
        %v788 = vstv %s697
        %v789 = vmul.f32 %v788, %v685
        %v790 = vmul.f32 %v788, %v686
        %v791 = vadd.f32 %v786, %v789
        %v792 = vadd.f32 %v787, %v790
        %v793 = vstv %s698
        %v794 = vmul.f32 %v793, %v733
        %v795 = vmul.f32 %v793, %v736
        %v796 = vadd.f32 %v791, %v794
        %v797 = vadd.f32 %v792, %v795
        %v798 = vstv %s700
        %v799 = vadd.f32 %v796, %v798
        %v800 = vadd.f32 %v797, %v798
        %v801 = vmax.f32 %v799, 0.0
        %v802 = vmax.f32 %v800, 0.0
        %v803 = vpack.c.bf16 %v768, %v768
        %v804 = vpack.c.bf16 %v769, %v769
        %v805 = vld [vmem:[#allocation11] sm:$0xff]
        %v806 = vld [vmem:[#allocation11 + $0x8] sm:$0xff]
        %v807 = vld [vmem:[#allocation11 + $0x10] sm:$0xff]
        %v808 = vld [vmem:[#allocation11 + $0x18] sm:$0xff]
        %v809 = vld [vmem:[#allocation11 + $0x20] sm:$0xff]
        %v810 = vld [vmem:[#allocation11 + $0x28] sm:$0xff]
        %v811 = vld [vmem:[#allocation11 + $0x30] sm:$0xff]
        %v812 = vld [vmem:[#allocation11 + $0x38] sm:$0xff]
        %v813 = vld [vmem:[#allocation11 + $0x40] sm:$0xff]
        %v814 = vld [vmem:[#allocation11 + $0x48] sm:$0xff]
        %v815 = vld [vmem:[#allocation11 + $0x50] sm:$0xff]
        %v816 = vld [vmem:[#allocation11 + $0x58] sm:$0xff]
        %v817 = vld [vmem:[#allocation11 + $0x60] sm:$0xff]
        %v818 = vld [vmem:[#allocation11 + $0x68] sm:$0xff]
        %v819 = vld [vmem:[#allocation11 + $0x70] sm:$0xff]
        %v820 = vld [vmem:[#allocation11 + $0x78] sm:$0xff]
        %v821 = vld [vmem:[#allocation11 + $0x80] sm:$0xff]
        %v822 = vld [vmem:[#allocation11 + $0x88] sm:$0xff]
        %v823 = vld [vmem:[#allocation11 + $0x90] sm:$0xff]
        %v824 = vld [vmem:[#allocation11 + $0x98] sm:$0xff]
        %v825 = vld [vmem:[#allocation11 + $0xa0] sm:$0xff]
        %v826 = vld [vmem:[#allocation11 + $0xa8] sm:$0xff]
        %v827 = vld [vmem:[#allocation11 + $0xb0] sm:$0xff]
        %v828 = vld [vmem:[#allocation11 + $0xb8] sm:$0xff]
        %v829 = vld [vmem:[#allocation11 + $0xc0] sm:$0xff]
        %v830 = vld [vmem:[#allocation11 + $0xc8] sm:$0xff]
        %v831 = vld [vmem:[#allocation11 + $0xd0] sm:$0xff]
        %v832 = vld [vmem:[#allocation11 + $0xd8] sm:$0xff]
        %v833 = vld [vmem:[#allocation11 + $0xe0] sm:$0xff]
        %v834 = vld [vmem:[#allocation11 + $0xe8] sm:$0xff]
        %v835 = vld [vmem:[#allocation11 + $0xf0] sm:$0xff]
        %v836 = vld [vmem:[#allocation11 + $0xf8] sm:$0xff]
        %v837 = vld [vmem:[#allocation11 + $0x100] sm:$0xff]
        %v838 = vld [vmem:[#allocation11 + $0x108] sm:$0xff]
        %v839 = vld [vmem:[#allocation11 + $0x110] sm:$0xff]
        %v840 = vld [vmem:[#allocation11 + $0x118] sm:$0xff]
        %v841 = vld [vmem:[#allocation11 + $0x120] sm:$0xff]
        %v842 = vld [vmem:[#allocation11 + $0x128] sm:$0xff]
        %v843 = vld [vmem:[#allocation11 + $0x130] sm:$0xff]
        %v844 = vld [vmem:[#allocation11 + $0x138] sm:$0xff]
        %v845 = vld [vmem:[#allocation11 + $0x140] sm:$0xff]
        %v846 = vld [vmem:[#allocation11 + $0x148] sm:$0xff]
        %v847 = vld [vmem:[#allocation11 + $0x150] sm:$0xff]
        %v848 = vld [vmem:[#allocation11 + $0x158] sm:$0xff]
        %v849 = vld [vmem:[#allocation11 + $0x160] sm:$0xff]
        %v850 = vld [vmem:[#allocation11 + $0x168] sm:$0xff]
        %v851 = vld [vmem:[#allocation11 + $0x170] sm:$0xff]
        %v852 = vld [vmem:[#allocation11 + $0x178] sm:$0xff]
        %v853 = vld [vmem:[#allocation11 + $0x180] sm:$0xff]
        %v854 = vld [vmem:[#allocation11 + $0x188] sm:$0xff]
        %v855 = vld [vmem:[#allocation11 + $0x190] sm:$0xff]
        %v856 = vld [vmem:[#allocation11 + $0x198] sm:$0xff]
        %v857 = vld [vmem:[#allocation11 + $0x1a0] sm:$0xff]
        %v858 = vld [vmem:[#allocation11 + $0x1a8] sm:$0xff]
        %v859 = vld [vmem:[#allocation11 + $0x1b0] sm:$0xff]
        %v860 = vld [vmem:[#allocation11 + $0x1b8] sm:$0xff]
        %v861 = vld [vmem:[#allocation11 + $0x1c0] sm:$0xff]
        %v862 = vld [vmem:[#allocation11 + $0x1c8] sm:$0xff]
        %v863 = vld [vmem:[#allocation11 + $0x1d0] sm:$0xff]
        %v864 = vld [vmem:[#allocation11 + $0x1d8] sm:$0xff]
        %v865 = vld [vmem:[#allocation11 + $0x1e0] sm:$0xff]
        %v866 = vld [vmem:[#allocation11 + $0x1e8] sm:$0xff]
        %v867 = vld [vmem:[#allocation11 + $0x1f0] sm:$0xff]
        %v868 = vld [vmem:[#allocation11 + $0x1f8] sm:$0xff]
        %v869 = vpack.c.bf16 %v801, %v801
        %v870 = vpack.c.bf16 %v802, %v802
        %v871 = vld [vmem:[#allocation12] sm:$0xff]
        %v872 = vld [vmem:[#allocation12 + $0x8] sm:$0xff]
        %v873 = vld [vmem:[#allocation12 + $0x10] sm:$0xff]
        %v874 = vld [vmem:[#allocation12 + $0x18] sm:$0xff]
        %v875 = vld [vmem:[#allocation12 + $0x20] sm:$0xff]
        %v876 = vld [vmem:[#allocation12 + $0x28] sm:$0xff]
        %v877 = vld [vmem:[#allocation12 + $0x30] sm:$0xff]
        %v878 = vld [vmem:[#allocation12 + $0x38] sm:$0xff]
        %v879 = vld [vmem:[#allocation12 + $0x40] sm:$0xff]
        %v880 = vld [vmem:[#allocation12 + $0x48] sm:$0xff]
        %v881 = vld [vmem:[#allocation12 + $0x50] sm:$0xff]
        %v882 = vld [vmem:[#allocation12 + $0x58] sm:$0xff]
        %v883 = vld [vmem:[#allocation12 + $0x60] sm:$0xff]
        %v884 = vld [vmem:[#allocation12 + $0x68] sm:$0xff]
        %v885 = vld [vmem:[#allocation12 + $0x70] sm:$0xff]
        %v886 = vld [vmem:[#allocation12 + $0x78] sm:$0xff]
        %v887 = vld [vmem:[#allocation12 + $0x80] sm:$0xff]
        %v888 = vld [vmem:[#allocation12 + $0x88] sm:$0xff]
        %v889 = vld [vmem:[#allocation12 + $0x90] sm:$0xff]
        %v890 = vld [vmem:[#allocation12 + $0x98] sm:$0xff]
        %v891 = vld [vmem:[#allocation12 + $0xa0] sm:$0xff]
        %v892 = vld [vmem:[#allocation12 + $0xa8] sm:$0xff]
        %v893 = vld [vmem:[#allocation12 + $0xb0] sm:$0xff]
        %v894 = vld [vmem:[#allocation12 + $0xb8] sm:$0xff]
        %v895 = vld [vmem:[#allocation12 + $0xc0] sm:$0xff]
        %v896 = vld [vmem:[#allocation12 + $0xc8] sm:$0xff]
        %v897 = vld [vmem:[#allocation12 + $0xd0] sm:$0xff]
        %v898 = vld [vmem:[#allocation12 + $0xd8] sm:$0xff]
        %v899 = vld [vmem:[#allocation12 + $0xe0] sm:$0xff]
        %v900 = vld [vmem:[#allocation12 + $0xe8] sm:$0xff]
        %v901 = vld [vmem:[#allocation12 + $0xf0] sm:$0xff]
        %v902 = vld [vmem:[#allocation12 + $0xf8] sm:$0xff]
        %v903 = vld [vmem:[#allocation12 + $0x100] sm:$0xff]
        %v904 = vld [vmem:[#allocation12 + $0x108] sm:$0xff]
        %v905 = vld [vmem:[#allocation12 + $0x110] sm:$0xff]
        %v906 = vld [vmem:[#allocation12 + $0x118] sm:$0xff]
        %v907 = vld [vmem:[#allocation12 + $0x120] sm:$0xff]
        %v908 = vld [vmem:[#allocation12 + $0x128] sm:$0xff]
        %v909 = vld [vmem:[#allocation12 + $0x130] sm:$0xff]
        %v910 = vld [vmem:[#allocation12 + $0x138] sm:$0xff]
        %v911 = vld [vmem:[#allocation12 + $0x140] sm:$0xff]
        %v912 = vld [vmem:[#allocation12 + $0x148] sm:$0xff]
        %v913 = vld [vmem:[#allocation12 + $0x150] sm:$0xff]
        %v914 = vld [vmem:[#allocation12 + $0x158] sm:$0xff]
        %v915 = vld [vmem:[#allocation12 + $0x160] sm:$0xff]
        %v916 = vld [vmem:[#allocation12 + $0x168] sm:$0xff]
        %v917 = vld [vmem:[#allocation12 + $0x170] sm:$0xff]
        %v918 = vld [vmem:[#allocation12 + $0x178] sm:$0xff]
        %v919 = vld [vmem:[#allocation12 + $0x180] sm:$0xff]
        %v920 = vld [vmem:[#allocation12 + $0x188] sm:$0xff]
        %v921 = vld [vmem:[#allocation12 + $0x190] sm:$0xff]
        %v922 = vld [vmem:[#allocation12 + $0x198] sm:$0xff]
        %v923 = vld [vmem:[#allocation12 + $0x1a0] sm:$0xff]
        %v924 = vld [vmem:[#allocation12 + $0x1a8] sm:$0xff]
        %v925 = vld [vmem:[#allocation12 + $0x1b0] sm:$0xff]
        %v926 = vld [vmem:[#allocation12 + $0x1b8] sm:$0xff]
        %v927 = vld [vmem:[#allocation12 + $0x1c0] sm:$0xff]
        %v928 = vld [vmem:[#allocation12 + $0x1c8] sm:$0xff]
        %v929 = vld [vmem:[#allocation12 + $0x1d0] sm:$0xff]
        %v930 = vld [vmem:[#allocation12 + $0x1d8] sm:$0xff]
        %v931 = vld [vmem:[#allocation12 + $0x1e0] sm:$0xff]
        %v932 = vld [vmem:[#allocation12 + $0x1e8] sm:$0xff]
        %v933 = vld [vmem:[#allocation12 + $0x1f0] sm:$0xff]
        %v934 = vld [vmem:[#allocation12 + $0x1f8] sm:$0xff]
        %v999 = vunpack.c.l.b16 %v871
        %v1000 = vunpack.c.h.b16 %v871
        %v1001 = vunpack.c.l.b16 %v872
        %v1002 = vunpack.c.h.b16 %v872
        %v1003 = vunpack.c.l.b16 %v873
        %v1004 = vunpack.c.h.b16 %v873
        %v1005 = vunpack.c.l.b16 %v874
        %v1006 = vunpack.c.h.b16 %v874
        %v1007 = vunpack.c.l.b16 %v875
        %v1008 = vunpack.c.h.b16 %v875
        %v1009 = vunpack.c.l.b16 %v876
        %v1010 = vunpack.c.h.b16 %v876
        %v1011 = vunpack.c.l.b16 %v877
        %v1012 = vunpack.c.h.b16 %v877
        %v1013 = vunpack.c.l.b16 %v878
        %v1014 = vunpack.c.h.b16 %v878
        %v1015 = vunpack.c.l.b16 %v879
        %v1016 = vunpack.c.h.b16 %v879
        %v1017 = vunpack.c.l.b16 %v880
        %v1018 = vunpack.c.h.b16 %v880
        %v1019 = vunpack.c.l.b16 %v881
        %v1020 = vunpack.c.h.b16 %v881
        %v1021 = vunpack.c.l.b16 %v882
        %v1022 = vunpack.c.h.b16 %v882
        %v1023 = vunpack.c.l.b16 %v883
        %v1024 = vunpack.c.h.b16 %v883
        %v1025 = vunpack.c.l.b16 %v884
        %v1026 = vunpack.c.h.b16 %v884
        %v1027 = vunpack.c.l.b16 %v885
        %v1028 = vunpack.c.h.b16 %v885
        %v1029 = vunpack.c.l.b16 %v886
        %v1030 = vunpack.c.h.b16 %v886
        %v1031 = vunpack.c.l.b16 %v887
        %v1032 = vunpack.c.h.b16 %v887
        %v1033 = vunpack.c.l.b16 %v888
        %v1034 = vunpack.c.h.b16 %v888
        %v1035 = vunpack.c.l.b16 %v889
        %v1036 = vunpack.c.h.b16 %v889
        %v1037 = vunpack.c.l.b16 %v890
        %v1038 = vunpack.c.h.b16 %v890
        %v1039 = vunpack.c.l.b16 %v891
        %v1040 = vunpack.c.h.b16 %v891
        %v1041 = vunpack.c.l.b16 %v892
        %v1042 = vunpack.c.h.b16 %v892
        %v1043 = vunpack.c.l.b16 %v893
        %v1044 = vunpack.c.h.b16 %v893
        %v1045 = vunpack.c.l.b16 %v894
        %v1046 = vunpack.c.h.b16 %v894
        %v1047 = vunpack.c.l.b16 %v895
        %v1048 = vunpack.c.h.b16 %v895
        %v1049 = vunpack.c.l.b16 %v896
        %v1050 = vunpack.c.h.b16 %v896
        %v1051 = vunpack.c.l.b16 %v897
        %v1052 = vunpack.c.h.b16 %v897
        %v1053 = vunpack.c.l.b16 %v898
        %v1054 = vunpack.c.h.b16 %v898
        %v1055 = vunpack.c.l.b16 %v899
        %v1056 = vunpack.c.h.b16 %v899
        %v1057 = vunpack.c.l.b16 %v900
        %v1058 = vunpack.c.h.b16 %v900
        %v1059 = vunpack.c.l.b16 %v901
        %v1060 = vunpack.c.h.b16 %v901
        %v1061 = vunpack.c.l.b16 %v902
        %v1062 = vunpack.c.h.b16 %v902
        %v1063 = vunpack.c.l.b16 %v903
        %v1064 = vunpack.c.h.b16 %v903
        %v1065 = vunpack.c.l.b16 %v904
        %v1066 = vunpack.c.h.b16 %v904
        %v1067 = vunpack.c.l.b16 %v905
        %v1068 = vunpack.c.h.b16 %v905
        %v1069 = vunpack.c.l.b16 %v906
        %v1070 = vunpack.c.h.b16 %v906
        %v1071 = vunpack.c.l.b16 %v907
        %v1072 = vunpack.c.h.b16 %v907
        %v1073 = vunpack.c.l.b16 %v908
        %v1074 = vunpack.c.h.b16 %v908
        %v1075 = vunpack.c.l.b16 %v909
        %v1076 = vunpack.c.h.b16 %v909
        %v1077 = vunpack.c.l.b16 %v910
        %v1078 = vunpack.c.h.b16 %v910
        %v1079 = vunpack.c.l.b16 %v911
        %v1080 = vunpack.c.h.b16 %v911
        %v1081 = vunpack.c.l.b16 %v912
        %v1082 = vunpack.c.h.b16 %v912
        %v1083 = vunpack.c.l.b16 %v913
        %v1084 = vunpack.c.h.b16 %v913
        %v1085 = vunpack.c.l.b16 %v914
        %v1086 = vunpack.c.h.b16 %v914
        %v1087 = vunpack.c.l.b16 %v915
        %v1088 = vunpack.c.h.b16 %v915
        %v1089 = vunpack.c.l.b16 %v916
        %v1090 = vunpack.c.h.b16 %v916
        %v1091 = vunpack.c.l.b16 %v917
        %v1092 = vunpack.c.h.b16 %v917
        %v1093 = vunpack.c.l.b16 %v918
        %v1094 = vunpack.c.h.b16 %v918
        %v1095 = vunpack.c.l.b16 %v919
        %v1096 = vunpack.c.h.b16 %v919
        %v1097 = vunpack.c.l.b16 %v920
        %v1098 = vunpack.c.h.b16 %v920
        %v1099 = vunpack.c.l.b16 %v921
        %v1100 = vunpack.c.h.b16 %v921
        %v1101 = vunpack.c.l.b16 %v922
        %v1102 = vunpack.c.h.b16 %v922
        %v1103 = vunpack.c.l.b16 %v923
        %v1104 = vunpack.c.h.b16 %v923
        %v1105 = vunpack.c.l.b16 %v924
        %v1106 = vunpack.c.h.b16 %v924
        %v1107 = vunpack.c.l.b16 %v925
        %v1108 = vunpack.c.h.b16 %v925
        %v1109 = vunpack.c.l.b16 %v926
        %v1110 = vunpack.c.h.b16 %v926
        %v1111 = vunpack.c.l.b16 %v927
        %v1112 = vunpack.c.h.b16 %v927
        %v1113 = vunpack.c.l.b16 %v928
        %v1114 = vunpack.c.h.b16 %v928
        %v1115 = vunpack.c.l.b16 %v929
        %v1116 = vunpack.c.h.b16 %v929
        %v1117 = vunpack.c.l.b16 %v930
        %v1118 = vunpack.c.h.b16 %v930
        %v1119 = vunpack.c.l.b16 %v931
        %v1120 = vunpack.c.h.b16 %v931
        %v1121 = vunpack.c.l.b16 %v932
        %v1122 = vunpack.c.h.b16 %v932
        %v1123 = vunpack.c.l.b16 %v933
        %v1124 = vunpack.c.h.b16 %v933
        %v1125 = vunpack.c.l.b16 %v934
        %v1126 = vunpack.c.h.b16 %v934
        %v1127 = vpack.c.b16 %v1003, %v999
        %v1128 = vpack.c.b16 %v1004, %v1000
        %v1129 = vpack.c.b16 %v1005, %v1001
        %v1130 = vpack.c.b16 %v1006, %v1002
        %v1131 = vpack.c.b16 %v1011, %v1007
        %v1132 = vpack.c.b16 %v1012, %v1008
        %v1133 = vpack.c.b16 %v1013, %v1009
        %v1134 = vpack.c.b16 %v1014, %v1010
        %v1135 = vpack.c.b16 %v1019, %v1015
        %v1136 = vpack.c.b16 %v1020, %v1016
        %v1137 = vpack.c.b16 %v1021, %v1017
        %v1138 = vpack.c.b16 %v1022, %v1018
        %v1139 = vpack.c.b16 %v1027, %v1023
        %v1140 = vpack.c.b16 %v1028, %v1024
        %v1141 = vpack.c.b16 %v1029, %v1025
        %v1142 = vpack.c.b16 %v1030, %v1026
        %v1143 = vpack.c.b16 %v1035, %v1031
        %v1144 = vpack.c.b16 %v1036, %v1032
        %v1145 = vpack.c.b16 %v1037, %v1033
        %v1146 = vpack.c.b16 %v1038, %v1034
        %v1147 = vpack.c.b16 %v1043, %v1039
        %v1148 = vpack.c.b16 %v1044, %v1040
        %v1149 = vpack.c.b16 %v1045, %v1041
        %v1150 = vpack.c.b16 %v1046, %v1042
        %v1151 = vpack.c.b16 %v1051, %v1047
        %v1152 = vpack.c.b16 %v1052, %v1048
        %v1153 = vpack.c.b16 %v1053, %v1049
        %v1154 = vpack.c.b16 %v1054, %v1050
        %v1155 = vpack.c.b16 %v1059, %v1055
        %v1156 = vpack.c.b16 %v1060, %v1056
        %v1157 = vpack.c.b16 %v1061, %v1057
        %v1158 = vpack.c.b16 %v1062, %v1058
        %v1159 = vpack.c.b16 %v1067, %v1063
        %v1160 = vpack.c.b16 %v1068, %v1064
        %v1161 = vpack.c.b16 %v1069, %v1065
        %v1162 = vpack.c.b16 %v1070, %v1066
        %v1163 = vpack.c.b16 %v1075, %v1071
        %v1164 = vpack.c.b16 %v1076, %v1072
        %v1165 = vpack.c.b16 %v1077, %v1073
        %v1166 = vpack.c.b16 %v1078, %v1074
        %v1167 = vpack.c.b16 %v1083, %v1079
        %v1168 = vpack.c.b16 %v1084, %v1080
        %v1169 = vpack.c.b16 %v1085, %v1081
        %v1170 = vpack.c.b16 %v1086, %v1082
        %v1171 = vpack.c.b16 %v1091, %v1087
        %v1172 = vpack.c.b16 %v1092, %v1088
        %v1173 = vpack.c.b16 %v1093, %v1089
        %v1174 = vpack.c.b16 %v1094, %v1090
        %v1175 = vpack.c.b16 %v1099, %v1095
        %v1176 = vpack.c.b16 %v1100, %v1096
        %v1177 = vpack.c.b16 %v1101, %v1097
        %v1178 = vpack.c.b16 %v1102, %v1098
        %v1179 = vpack.c.b16 %v1107, %v1103
        %v1180 = vpack.c.b16 %v1108, %v1104
        %v1181 = vpack.c.b16 %v1109, %v1105
        %v1182 = vpack.c.b16 %v1110, %v1106
        %v1183 = vpack.c.b16 %v1115, %v1111
        %v1184 = vpack.c.b16 %v1116, %v1112
        %v1185 = vpack.c.b16 %v1117, %v1113
        %v1186 = vpack.c.b16 %v1118, %v1114
        %v1187 = vpack.c.b16 %v1123, %v1119
        %v1188 = vpack.c.b16 %v1124, %v1120
        %v1189 = vpack.c.b16 %v1125, %v1121
        %v1190 = vpack.c.b16 %v1126, %v1122
        %1255 = vmatprep.subr.bf16.mxu0 %v1156
        %1256 = vmatpush1.bf16.msra.mxu0 %v1155
        %1257 = vmatprep.subr.bf16.mxu0 %v1152
        %1258 = vmatpush1.bf16.msra.mxu0 %v1151
        %1259 = vmatprep.subr.bf16.mxu0 %v1148
        %1260 = vmatpush1.bf16.msra.mxu0 %v1147
        %1261 = vmatprep.subr.bf16.mxu0 %v1144
        %1262 = vmatpush1.bf16.msra.mxu0 %v1143
        %1263 = vmatprep.subr.bf16.mxu0 %v1140
        %1264 = vmatpush1.bf16.msra.mxu0 %v1139
        %1265 = vmatprep.subr.bf16.mxu0 %v1136
        %1266 = vmatpush1.bf16.msra.mxu0 %v1135
        %1267 = vmatprep.subr.bf16.mxu0 %v1132
        %1268 = vmatpush1.bf16.msra.mxu0 %v1131
        %1269 = vmatprep.subr.bf16.mxu0 %v1128
        %1270 = vmatpush1.bf16.msra.mxu0 %v1127
        %1271 = vmatprep.subr.bf16.mxu0 %v1188
        %1272 = vmatpush2.bf16.msra.mxu0 %v1187
        %1273 = vmatprep.subr.bf16.mxu0 %v1184
        %1274 = vmatpush2.bf16.msra.mxu0 %v1183
        %1275 = vmatprep.subr.bf16.mxu0 %v1180
        %1276 = vmatpush2.bf16.msra.mxu0 %v1179
        %1277 = vmatprep.subr.bf16.mxu0 %v1176
        %1278 = vmatpush2.bf16.msra.mxu0 %v1175
        %1279 = vmatprep.subr.bf16.mxu0 %v1172
        %1280 = vmatpush2.bf16.msra.mxu0 %v1171
        %1281 = vmatprep.subr.bf16.mxu0 %v1168
        %1282 = vmatpush2.bf16.msra.mxu0 %v1167
        %1283 = vmatprep.subr.bf16.mxu0 %v1164
        %1284 = vmatpush2.bf16.msra.mxu0 %v1163
        %1285 = vmatprep.subr.bf16.mxu0 %v1160
        %1286 = vmatpush2.bf16.msra.mxu0 %v1159
        %1287 = vmatprep.mubr.bf16.mxu0 %v870
        %1288 = vmatmul.mubr.bf16.gmra.mxu0 %v869
        %v1289 = vpop.f32.mrf.mxu0
        %v1290 = vadd.f32 0.0, %v1289
        %v1291 = vpop.f32.mrf.mxu0
        %v1292 = vadd.f32 0.0, %v1291
        %v1293 = vpop.f32.mrf.mxu0
        %v1294 = vpop.f32.mrf.mxu0
        %1295 = vdwg.mxu0
        %1296 = vmatprep.subr.bf16.mxu0 %v1158
        %1297 = vmatpush1.bf16.msra.mxu0 %v1157
        %1298 = vmatprep.subr.bf16.mxu0 %v1154
        %1299 = vmatpush1.bf16.msra.mxu0 %v1153
        %1300 = vmatprep.subr.bf16.mxu0 %v1150
        %1301 = vmatpush1.bf16.msra.mxu0 %v1149
        %1302 = vmatprep.subr.bf16.mxu0 %v1146
        %1303 = vmatpush1.bf16.msra.mxu0 %v1145
        %1304 = vmatprep.subr.bf16.mxu0 %v1142
        %1305 = vmatpush1.bf16.msra.mxu0 %v1141
        %1306 = vmatprep.subr.bf16.mxu0 %v1138
        %1307 = vmatpush1.bf16.msra.mxu0 %v1137
        %1308 = vmatprep.subr.bf16.mxu0 %v1134
        %1309 = vmatpush1.bf16.msra.mxu0 %v1133
        %1310 = vmatprep.subr.bf16.mxu0 %v1130
        %1311 = vmatpush1.bf16.msra.mxu0 %v1129
        %1312 = vmatprep.subr.bf16.mxu0 %v1190
        %1313 = vmatpush2.bf16.msra.mxu0 %v1189
        %1314 = vmatprep.subr.bf16.mxu0 %v1186
        %1315 = vmatpush2.bf16.msra.mxu0 %v1185
        %1316 = vmatprep.subr.bf16.mxu0 %v1182
        %1317 = vmatpush2.bf16.msra.mxu0 %v1181
        %1318 = vmatprep.subr.bf16.mxu0 %v1178
        %1319 = vmatpush2.bf16.msra.mxu0 %v1177
        %1320 = vmatprep.subr.bf16.mxu0 %v1174
        %1321 = vmatpush2.bf16.msra.mxu0 %v1173
        %1322 = vmatprep.subr.bf16.mxu0 %v1170
        %1323 = vmatpush2.bf16.msra.mxu0 %v1169
        %1324 = vmatprep.subr.bf16.mxu0 %v1166
        %1325 = vmatpush2.bf16.msra.mxu0 %v1165
        %1326 = vmatprep.subr.bf16.mxu0 %v1162
        %1327 = vmatpush2.bf16.msra.mxu0 %v1161
        %1328 = vmatprep.mubr.bf16.mxu0 %v870
        %1329 = vmatmul.mubr.bf16.gmra.mxu0 %v869
        %v1330 = vpop.f32.mrf.mxu0
        %v1331 = vadd.f32 0.0, %v1330
        %v1332 = vpop.f32.mrf.mxu0
        %v1333 = vadd.f32 0.0, %v1332
        %v1334 = vpop.f32.mrf.mxu0
        %v1335 = vpop.f32.mrf.mxu0
        %1336 = vdwg.mxu0
        %v1401 = vunpack.c.l.b16 %v805
        %v1402 = vunpack.c.h.b16 %v805
        %v1403 = vunpack.c.l.b16 %v806
        %v1404 = vunpack.c.h.b16 %v806
        %v1405 = vunpack.c.l.b16 %v807
        %v1406 = vunpack.c.h.b16 %v807
        %v1407 = vunpack.c.l.b16 %v808
        %v1408 = vunpack.c.h.b16 %v808
        %v1409 = vunpack.c.l.b16 %v809
        %v1410 = vunpack.c.h.b16 %v809
        %v1411 = vunpack.c.l.b16 %v810
        %v1412 = vunpack.c.h.b16 %v810
        %v1413 = vunpack.c.l.b16 %v811
        %v1414 = vunpack.c.h.b16 %v811
        %v1415 = vunpack.c.l.b16 %v812
        %v1416 = vunpack.c.h.b16 %v812
        %v1417 = vunpack.c.l.b16 %v813
        %v1418 = vunpack.c.h.b16 %v813
        %v1419 = vunpack.c.l.b16 %v814
        %v1420 = vunpack.c.h.b16 %v814
        %v1421 = vunpack.c.l.b16 %v815
        %v1422 = vunpack.c.h.b16 %v815
        %v1423 = vunpack.c.l.b16 %v816
        %v1424 = vunpack.c.h.b16 %v816
        %v1425 = vunpack.c.l.b16 %v817
        %v1426 = vunpack.c.h.b16 %v817
        %v1427 = vunpack.c.l.b16 %v818
        %v1428 = vunpack.c.h.b16 %v818
        %v1429 = vunpack.c.l.b16 %v819
        %v1430 = vunpack.c.h.b16 %v819
        %v1431 = vunpack.c.l.b16 %v820
        %v1432 = vunpack.c.h.b16 %v820
        %v1433 = vunpack.c.l.b16 %v821
        %v1434 = vunpack.c.h.b16 %v821
        %v1435 = vunpack.c.l.b16 %v822
        %v1436 = vunpack.c.h.b16 %v822
        %v1437 = vunpack.c.l.b16 %v823
        %v1438 = vunpack.c.h.b16 %v823
        %v1439 = vunpack.c.l.b16 %v824
        %v1440 = vunpack.c.h.b16 %v824
        %v1441 = vunpack.c.l.b16 %v825
        %v1442 = vunpack.c.h.b16 %v825
        %v1443 = vunpack.c.l.b16 %v826
        %v1444 = vunpack.c.h.b16 %v826
        %v1445 = vunpack.c.l.b16 %v827
        %v1446 = vunpack.c.h.b16 %v827
        %v1447 = vunpack.c.l.b16 %v828
        %v1448 = vunpack.c.h.b16 %v828
        %v1449 = vunpack.c.l.b16 %v829
        %v1450 = vunpack.c.h.b16 %v829
        %v1451 = vunpack.c.l.b16 %v830
        %v1452 = vunpack.c.h.b16 %v830
        %v1453 = vunpack.c.l.b16 %v831
        %v1454 = vunpack.c.h.b16 %v831
        %v1455 = vunpack.c.l.b16 %v832
        %v1456 = vunpack.c.h.b16 %v832
        %v1457 = vunpack.c.l.b16 %v833
        %v1458 = vunpack.c.h.b16 %v833
        %v1459 = vunpack.c.l.b16 %v834
        %v1460 = vunpack.c.h.b16 %v834
        %v1461 = vunpack.c.l.b16 %v835
        %v1462 = vunpack.c.h.b16 %v835
        %v1463 = vunpack.c.l.b16 %v836
        %v1464 = vunpack.c.h.b16 %v836
        %v1465 = vunpack.c.l.b16 %v837
        %v1466 = vunpack.c.h.b16 %v837
        %v1467 = vunpack.c.l.b16 %v838
        %v1468 = vunpack.c.h.b16 %v838
        %v1469 = vunpack.c.l.b16 %v839
        %v1470 = vunpack.c.h.b16 %v839
        %v1471 = vunpack.c.l.b16 %v840
        %v1472 = vunpack.c.h.b16 %v840
        %v1473 = vunpack.c.l.b16 %v841
        %v1474 = vunpack.c.h.b16 %v841
        %v1475 = vunpack.c.l.b16 %v842
        %v1476 = vunpack.c.h.b16 %v842
        %v1477 = vunpack.c.l.b16 %v843
        %v1478 = vunpack.c.h.b16 %v843
        %v1479 = vunpack.c.l.b16 %v844
        %v1480 = vunpack.c.h.b16 %v844
        %v1481 = vunpack.c.l.b16 %v845
        %v1482 = vunpack.c.h.b16 %v845
        %v1483 = vunpack.c.l.b16 %v846
        %v1484 = vunpack.c.h.b16 %v846
        %v1485 = vunpack.c.l.b16 %v847
        %v1486 = vunpack.c.h.b16 %v847
        %v1487 = vunpack.c.l.b16 %v848
        %v1488 = vunpack.c.h.b16 %v848
        %v1489 = vunpack.c.l.b16 %v849
        %v1490 = vunpack.c.h.b16 %v849
        %v1491 = vunpack.c.l.b16 %v850
        %v1492 = vunpack.c.h.b16 %v850
        %v1493 = vunpack.c.l.b16 %v851
        %v1494 = vunpack.c.h.b16 %v851
        %v1495 = vunpack.c.l.b16 %v852
        %v1496 = vunpack.c.h.b16 %v852
        %v1497 = vunpack.c.l.b16 %v853
        %v1498 = vunpack.c.h.b16 %v853
        %v1499 = vunpack.c.l.b16 %v854
        %v1500 = vunpack.c.h.b16 %v854
        %v1501 = vunpack.c.l.b16 %v855
        %v1502 = vunpack.c.h.b16 %v855
        %v1503 = vunpack.c.l.b16 %v856
        %v1504 = vunpack.c.h.b16 %v856
        %v1505 = vunpack.c.l.b16 %v857
        %v1506 = vunpack.c.h.b16 %v857
        %v1507 = vunpack.c.l.b16 %v858
        %v1508 = vunpack.c.h.b16 %v858
        %v1509 = vunpack.c.l.b16 %v859
        %v1510 = vunpack.c.h.b16 %v859
        %v1511 = vunpack.c.l.b16 %v860
        %v1512 = vunpack.c.h.b16 %v860
        %v1513 = vunpack.c.l.b16 %v861
        %v1514 = vunpack.c.h.b16 %v861
        %v1515 = vunpack.c.l.b16 %v862
        %v1516 = vunpack.c.h.b16 %v862
        %v1517 = vunpack.c.l.b16 %v863
        %v1518 = vunpack.c.h.b16 %v863
        %v1519 = vunpack.c.l.b16 %v864
        %v1520 = vunpack.c.h.b16 %v864
        %v1521 = vunpack.c.l.b16 %v865
        %v1522 = vunpack.c.h.b16 %v865
        %v1523 = vunpack.c.l.b16 %v866
        %v1524 = vunpack.c.h.b16 %v866
        %v1525 = vunpack.c.l.b16 %v867
        %v1526 = vunpack.c.h.b16 %v867
        %v1527 = vunpack.c.l.b16 %v868
        %v1528 = vunpack.c.h.b16 %v868
        %v1529 = vpack.c.b16 %v1405, %v1401
        %v1530 = vpack.c.b16 %v1406, %v1402
        %v1531 = vpack.c.b16 %v1407, %v1403
        %v1532 = vpack.c.b16 %v1408, %v1404
        %v1533 = vpack.c.b16 %v1413, %v1409
        %v1534 = vpack.c.b16 %v1414, %v1410
        %v1535 = vpack.c.b16 %v1415, %v1411
        %v1536 = vpack.c.b16 %v1416, %v1412
        %v1537 = vpack.c.b16 %v1421, %v1417
        %v1538 = vpack.c.b16 %v1422, %v1418
        %v1539 = vpack.c.b16 %v1423, %v1419
        %v1540 = vpack.c.b16 %v1424, %v1420
        %v1541 = vpack.c.b16 %v1429, %v1425
        %v1542 = vpack.c.b16 %v1430, %v1426
        %v1543 = vpack.c.b16 %v1431, %v1427
        %v1544 = vpack.c.b16 %v1432, %v1428
        %v1545 = vpack.c.b16 %v1437, %v1433
        %v1546 = vpack.c.b16 %v1438, %v1434
        %v1547 = vpack.c.b16 %v1439, %v1435
        %v1548 = vpack.c.b16 %v1440, %v1436
        %v1549 = vpack.c.b16 %v1445, %v1441
        %v1550 = vpack.c.b16 %v1446, %v1442
        %v1551 = vpack.c.b16 %v1447, %v1443
        %v1552 = vpack.c.b16 %v1448, %v1444
        %v1553 = vpack.c.b16 %v1453, %v1449
        %v1554 = vpack.c.b16 %v1454, %v1450
        %v1555 = vpack.c.b16 %v1455, %v1451
        %v1556 = vpack.c.b16 %v1456, %v1452
        %v1557 = vpack.c.b16 %v1461, %v1457
        %v1558 = vpack.c.b16 %v1462, %v1458
        %v1559 = vpack.c.b16 %v1463, %v1459
        %v1560 = vpack.c.b16 %v1464, %v1460
        %v1561 = vpack.c.b16 %v1469, %v1465
        %v1562 = vpack.c.b16 %v1470, %v1466
        %v1563 = vpack.c.b16 %v1471, %v1467
        %v1564 = vpack.c.b16 %v1472, %v1468
        %v1565 = vpack.c.b16 %v1477, %v1473
        %v1566 = vpack.c.b16 %v1478, %v1474
        %v1567 = vpack.c.b16 %v1479, %v1475
        %v1568 = vpack.c.b16 %v1480, %v1476
        %v1569 = vpack.c.b16 %v1485, %v1481
        %v1570 = vpack.c.b16 %v1486, %v1482
        %v1571 = vpack.c.b16 %v1487, %v1483
        %v1572 = vpack.c.b16 %v1488, %v1484
        %v1573 = vpack.c.b16 %v1493, %v1489
        %v1574 = vpack.c.b16 %v1494, %v1490
        %v1575 = vpack.c.b16 %v1495, %v1491
        %v1576 = vpack.c.b16 %v1496, %v1492
        %v1577 = vpack.c.b16 %v1501, %v1497
        %v1578 = vpack.c.b16 %v1502, %v1498
        %v1579 = vpack.c.b16 %v1503, %v1499
        %v1580 = vpack.c.b16 %v1504, %v1500
        %v1581 = vpack.c.b16 %v1509, %v1505
        %v1582 = vpack.c.b16 %v1510, %v1506
        %v1583 = vpack.c.b16 %v1511, %v1507
        %v1584 = vpack.c.b16 %v1512, %v1508
        %v1585 = vpack.c.b16 %v1517, %v1513
        %v1586 = vpack.c.b16 %v1518, %v1514
        %v1587 = vpack.c.b16 %v1519, %v1515
        %v1588 = vpack.c.b16 %v1520, %v1516
        %v1589 = vpack.c.b16 %v1525, %v1521
        %v1590 = vpack.c.b16 %v1526, %v1522
        %v1591 = vpack.c.b16 %v1527, %v1523
        %v1592 = vpack.c.b16 %v1528, %v1524
        %1657 = vmatprep.subr.bf16.mxu0 %v1558
        %1658 = vmatpush1.bf16.msra.mxu0 %v1557
        %1659 = vmatprep.subr.bf16.mxu0 %v1554
        %1660 = vmatpush1.bf16.msra.mxu0 %v1553
        %1661 = vmatprep.subr.bf16.mxu0 %v1550
        %1662 = vmatpush1.bf16.msra.mxu0 %v1549
        %1663 = vmatprep.subr.bf16.mxu0 %v1546
        %1664 = vmatpush1.bf16.msra.mxu0 %v1545
        %1665 = vmatprep.subr.bf16.mxu0 %v1542
        %1666 = vmatpush1.bf16.msra.mxu0 %v1541
        %1667 = vmatprep.subr.bf16.mxu0 %v1538
        %1668 = vmatpush1.bf16.msra.mxu0 %v1537
        %1669 = vmatprep.subr.bf16.mxu0 %v1534
        %1670 = vmatpush1.bf16.msra.mxu0 %v1533
        %1671 = vmatprep.subr.bf16.mxu0 %v1530
        %1672 = vmatpush1.bf16.msra.mxu0 %v1529
        %1673 = vmatprep.subr.bf16.mxu0 %v1590
        %1674 = vmatpush2.bf16.msra.mxu0 %v1589
        %1675 = vmatprep.subr.bf16.mxu0 %v1586
        %1676 = vmatpush2.bf16.msra.mxu0 %v1585
        %1677 = vmatprep.subr.bf16.mxu0 %v1582
        %1678 = vmatpush2.bf16.msra.mxu0 %v1581
        %1679 = vmatprep.subr.bf16.mxu0 %v1578
        %1680 = vmatpush2.bf16.msra.mxu0 %v1577
        %1681 = vmatprep.subr.bf16.mxu0 %v1574
        %1682 = vmatpush2.bf16.msra.mxu0 %v1573
        %1683 = vmatprep.subr.bf16.mxu0 %v1570
        %1684 = vmatpush2.bf16.msra.mxu0 %v1569
        %1685 = vmatprep.subr.bf16.mxu0 %v1566
        %1686 = vmatpush2.bf16.msra.mxu0 %v1565
        %1687 = vmatprep.subr.bf16.mxu0 %v1562
        %1688 = vmatpush2.bf16.msra.mxu0 %v1561
        %1689 = vmatprep.mubr.bf16.mxu0 %v804
        %1690 = vmatmul.mubr.bf16.gmra.mxu0 %v803
        %v1691 = vpop.f32.mrf.mxu0
        %v1692 = vadd.f32 %v1290, %v1691
        %v1693 = vpop.f32.mrf.mxu0
        %v1694 = vadd.f32 %v1292, %v1693
        %v1695 = vpop.f32.mrf.mxu0
        %v1696 = vpop.f32.mrf.mxu0
        %1697 = vdwg.mxu0
        %1698 = vmatprep.subr.bf16.mxu0 %v1560
        %1699 = vmatpush1.bf16.msra.mxu0 %v1559
        %1700 = vmatprep.subr.bf16.mxu0 %v1556
        %1701 = vmatpush1.bf16.msra.mxu0 %v1555
        %1702 = vmatprep.subr.bf16.mxu0 %v1552
        %1703 = vmatpush1.bf16.msra.mxu0 %v1551
        %1704 = vmatprep.subr.bf16.mxu0 %v1548
        %1705 = vmatpush1.bf16.msra.mxu0 %v1547
        %1706 = vmatprep.subr.bf16.mxu0 %v1544
        %1707 = vmatpush1.bf16.msra.mxu0 %v1543
        %1708 = vmatprep.subr.bf16.mxu0 %v1540
        %1709 = vmatpush1.bf16.msra.mxu0 %v1539
        %1710 = vmatprep.subr.bf16.mxu0 %v1536
        %1711 = vmatpush1.bf16.msra.mxu0 %v1535
        %1712 = vmatprep.subr.bf16.mxu0 %v1532
        %1713 = vmatpush1.bf16.msra.mxu0 %v1531
        %1714 = vmatprep.subr.bf16.mxu0 %v1592
        %1715 = vmatpush2.bf16.msra.mxu0 %v1591
        %1716 = vmatprep.subr.bf16.mxu0 %v1588
        %1717 = vmatpush2.bf16.msra.mxu0 %v1587
        %1718 = vmatprep.subr.bf16.mxu0 %v1584
        %1719 = vmatpush2.bf16.msra.mxu0 %v1583
        %1720 = vmatprep.subr.bf16.mxu0 %v1580
        %1721 = vmatpush2.bf16.msra.mxu0 %v1579
        %1722 = vmatprep.subr.bf16.mxu0 %v1576
        %1723 = vmatpush2.bf16.msra.mxu0 %v1575
        %1724 = vmatprep.subr.bf16.mxu0 %v1572
        %1725 = vmatpush2.bf16.msra.mxu0 %v1571
        %1726 = vmatprep.subr.bf16.mxu0 %v1568
        %1727 = vmatpush2.bf16.msra.mxu0 %v1567
        %1728 = vmatprep.subr.bf16.mxu0 %v1564
        %1729 = vmatpush2.bf16.msra.mxu0 %v1563
        %1730 = vmatprep.mubr.bf16.mxu0 %v804
        %1731 = vmatmul.mubr.bf16.gmra.mxu0 %v803
        %v1732 = vpop.f32.mrf.mxu0
        %v1733 = vadd.f32 %v1331, %v1732
        %v1734 = vpop.f32.mrf.mxu0
        %v1735 = vadd.f32 %v1333, %v1734
        %v1736 = vpop.f32.mrf.mxu0
        %v1737 = vpop.f32.mrf.mxu0
        %1738 = vdwg.mxu0
        %v1739 = vld [vmem:[%s8] sm:$0xf]
        %v1741 = vlaneseq
        %v1742 = vshrl.u32 %v1741, 7
        %v1743 = vsub.s32 0, %v1742
        %v1744 = vrot.slane %v1739, %v1743
        %v1745 = vlaneseq
        %v1746 = vshrl.u32 %v1745, 7
        %v1747 = vsub.s32 1, %v1746
        %v1748 = vrot.slane %v1739, %v1747
        %v1749 = vlaneseq
        %v1750 = vshrl.u32 %v1749, 7
        %v1751 = vsub.s32 2, %v1750
        %v1752 = vrot.slane %v1739, %v1751
        %v1753 = vlaneseq
        %v1754 = vshrl.u32 %v1753, 7
        %v1755 = vsub.s32 3, %v1754
        %v1756 = vrot.slane %v1739, %v1755
        %v1761 = vadd.f32 %v1692, %v1744
        %v1762 = vadd.f32 %v1694, %v1748
        %v1763 = vadd.f32 %v1733, %v1752
        %v1764 = vadd.f32 %v1735, %v1756
        %v1765 = vmax.f32 %v1761, 0.0
        %v1766 = vmax.f32 %v1762, 0.0
        %v1767 = vmax.f32 %v1763, 0.0
        %v1768 = vmax.f32 %v1764, 0.0
        %v1769 = vpack.c.bf16 %v1765, %v1765
        %v1770 = vpack.c.bf16 %v1766, %v1766
        %v1771 = vpack.c.bf16 %v1767, %v1767
        %v1772 = vpack.c.bf16 %v1768, %v1768
        %v1773 = vld [vmem:[#allocation14] sm:$0xff]
        %v1774 = vld [vmem:[#allocation14 + $0x8] sm:$0xff]
        %v1775 = vld [vmem:[#allocation14 + $0x10] sm:$0xff]
        %v1776 = vld [vmem:[#allocation14 + $0x18] sm:$0xff]
        %v1777 = vld [vmem:[#allocation14 + $0x20] sm:$0xff]
        %v1778 = vld [vmem:[#allocation14 + $0x28] sm:$0xff]
        %v1779 = vld [vmem:[#allocation14 + $0x30] sm:$0xff]
        %v1780 = vld [vmem:[#allocation14 + $0x38] sm:$0xff]
        %v1781 = vld [vmem:[#allocation14 + $0x40] sm:$0xff]
        %v1782 = vld [vmem:[#allocation14 + $0x48] sm:$0xff]
        %v1783 = vld [vmem:[#allocation14 + $0x50] sm:$0xff]
        %v1784 = vld [vmem:[#allocation14 + $0x58] sm:$0xff]
        %v1785 = vld [vmem:[#allocation14 + $0x60] sm:$0xff]
        %v1786 = vld [vmem:[#allocation14 + $0x68] sm:$0xff]
        %v1787 = vld [vmem:[#allocation14 + $0x70] sm:$0xff]
        %v1788 = vld [vmem:[#allocation14 + $0x78] sm:$0xff]
        %v1789 = vld [vmem:[#allocation14 + $0x80] sm:$0xff]
        %v1790 = vld [vmem:[#allocation14 + $0x88] sm:$0xff]
        %v1791 = vld [vmem:[#allocation14 + $0x90] sm:$0xff]
        %v1792 = vld [vmem:[#allocation14 + $0x98] sm:$0xff]
        %v1793 = vld [vmem:[#allocation14 + $0xa0] sm:$0xff]
        %v1794 = vld [vmem:[#allocation14 + $0xa8] sm:$0xff]
        %v1795 = vld [vmem:[#allocation14 + $0xb0] sm:$0xff]
        %v1796 = vld [vmem:[#allocation14 + $0xb8] sm:$0xff]
        %v1797 = vld [vmem:[#allocation14 + $0xc0] sm:$0xff]
        %v1798 = vld [vmem:[#allocation14 + $0xc8] sm:$0xff]
        %v1799 = vld [vmem:[#allocation14 + $0xd0] sm:$0xff]
        %v1800 = vld [vmem:[#allocation14 + $0xd8] sm:$0xff]
        %v1801 = vld [vmem:[#allocation14 + $0xe0] sm:$0xff]
        %v1802 = vld [vmem:[#allocation14 + $0xe8] sm:$0xff]
        %v1803 = vld [vmem:[#allocation14 + $0xf0] sm:$0xff]
        %v1804 = vld [vmem:[#allocation14 + $0xf8] sm:$0xff]
        %v1805 = vld [vmem:[#allocation14 + $0x100] sm:$0xff]
        %v1806 = vld [vmem:[#allocation14 + $0x108] sm:$0xff]
        %v1807 = vld [vmem:[#allocation14 + $0x110] sm:$0xff]
        %v1808 = vld [vmem:[#allocation14 + $0x118] sm:$0xff]
        %v1809 = vld [vmem:[#allocation14 + $0x120] sm:$0xff]
        %v1810 = vld [vmem:[#allocation14 + $0x128] sm:$0xff]
        %v1811 = vld [vmem:[#allocation14 + $0x130] sm:$0xff]
        %v1812 = vld [vmem:[#allocation14 + $0x138] sm:$0xff]
        %v1813 = vld [vmem:[#allocation14 + $0x140] sm:$0xff]
        %v1814 = vld [vmem:[#allocation14 + $0x148] sm:$0xff]
        %v1815 = vld [vmem:[#allocation14 + $0x150] sm:$0xff]
        %v1816 = vld [vmem:[#allocation14 + $0x158] sm:$0xff]
        %v1817 = vld [vmem:[#allocation14 + $0x160] sm:$0xff]
        %v1818 = vld [vmem:[#allocation14 + $0x168] sm:$0xff]
        %v1819 = vld [vmem:[#allocation14 + $0x170] sm:$0xff]
        %v1820 = vld [vmem:[#allocation14 + $0x178] sm:$0xff]
        %v1821 = vld [vmem:[#allocation14 + $0x180] sm:$0xff]
        %v1822 = vld [vmem:[#allocation14 + $0x188] sm:$0xff]
        %v1823 = vld [vmem:[#allocation14 + $0x190] sm:$0xff]
        %v1824 = vld [vmem:[#allocation14 + $0x198] sm:$0xff]
        %v1825 = vld [vmem:[#allocation14 + $0x1a0] sm:$0xff]
        %v1826 = vld [vmem:[#allocation14 + $0x1a8] sm:$0xff]
        %v1827 = vld [vmem:[#allocation14 + $0x1b0] sm:$0xff]
        %v1828 = vld [vmem:[#allocation14 + $0x1b8] sm:$0xff]
        %v1829 = vld [vmem:[#allocation14 + $0x1c0] sm:$0xff]
        %v1830 = vld [vmem:[#allocation14 + $0x1c8] sm:$0xff]
        %v1831 = vld [vmem:[#allocation14 + $0x1d0] sm:$0xff]
        %v1832 = vld [vmem:[#allocation14 + $0x1d8] sm:$0xff]
        %v1833 = vld [vmem:[#allocation14 + $0x1e0] sm:$0xff]
        %v1834 = vld [vmem:[#allocation14 + $0x1e8] sm:$0xff]
        %v1835 = vld [vmem:[#allocation14 + $0x1f0] sm:$0xff]
        %v1836 = vld [vmem:[#allocation14 + $0x1f8] sm:$0xff]
        %v1837 = vld [vmem:[%s10] sm:$0x3]
        %v1839 = vlaneseq
        %v1840 = vshrl.u32 %v1839, 7
        %v1841 = vsub.s32 0, %v1840
        %v1842 = vrot.slane %v1837, %v1841
        %v1843 = vlaneseq
        %v1844 = vshrl.u32 %v1843, 7
        %v1845 = vsub.s32 1, %v1844
        %v1846 = vrot.slane %v1837, %v1845
        %v1913 = vunpack.c.l.b16 %v1773
        %v1914 = vunpack.c.h.b16 %v1773
        %v1915 = vunpack.c.l.b16 %v1774
        %v1916 = vunpack.c.h.b16 %v1774
        %v1917 = vunpack.c.l.b16 %v1775
        %v1918 = vunpack.c.h.b16 %v1775
        %v1919 = vunpack.c.l.b16 %v1776
        %v1920 = vunpack.c.h.b16 %v1776
        %v1921 = vunpack.c.l.b16 %v1777
        %v1922 = vunpack.c.h.b16 %v1777
        %v1923 = vunpack.c.l.b16 %v1778
        %v1924 = vunpack.c.h.b16 %v1778
        %v1925 = vunpack.c.l.b16 %v1779
        %v1926 = vunpack.c.h.b16 %v1779
        %v1927 = vunpack.c.l.b16 %v1780
        %v1928 = vunpack.c.h.b16 %v1780
        %v1929 = vunpack.c.l.b16 %v1781
        %v1930 = vunpack.c.h.b16 %v1781
        %v1931 = vunpack.c.l.b16 %v1782
        %v1932 = vunpack.c.h.b16 %v1782
        %v1933 = vunpack.c.l.b16 %v1783
        %v1934 = vunpack.c.h.b16 %v1783
        %v1935 = vunpack.c.l.b16 %v1784
        %v1936 = vunpack.c.h.b16 %v1784
        %v1937 = vunpack.c.l.b16 %v1785
        %v1938 = vunpack.c.h.b16 %v1785
        %v1939 = vunpack.c.l.b16 %v1786
        %v1940 = vunpack.c.h.b16 %v1786
        %v1941 = vunpack.c.l.b16 %v1787
        %v1942 = vunpack.c.h.b16 %v1787
        %v1943 = vunpack.c.l.b16 %v1788
        %v1944 = vunpack.c.h.b16 %v1788
        %v1945 = vunpack.c.l.b16 %v1789
        %v1946 = vunpack.c.h.b16 %v1789
        %v1947 = vunpack.c.l.b16 %v1790
        %v1948 = vunpack.c.h.b16 %v1790
        %v1949 = vunpack.c.l.b16 %v1791
        %v1950 = vunpack.c.h.b16 %v1791
        %v1951 = vunpack.c.l.b16 %v1792
        %v1952 = vunpack.c.h.b16 %v1792
        %v1953 = vunpack.c.l.b16 %v1793
        %v1954 = vunpack.c.h.b16 %v1793
        %v1955 = vunpack.c.l.b16 %v1794
        %v1956 = vunpack.c.h.b16 %v1794
        %v1957 = vunpack.c.l.b16 %v1795
        %v1958 = vunpack.c.h.b16 %v1795
        %v1959 = vunpack.c.l.b16 %v1796
        %v1960 = vunpack.c.h.b16 %v1796
        %v1961 = vunpack.c.l.b16 %v1797
        %v1962 = vunpack.c.h.b16 %v1797
        %v1963 = vunpack.c.l.b16 %v1798
        %v1964 = vunpack.c.h.b16 %v1798
        %v1965 = vunpack.c.l.b16 %v1799
        %v1966 = vunpack.c.h.b16 %v1799
        %v1967 = vunpack.c.l.b16 %v1800
        %v1968 = vunpack.c.h.b16 %v1800
        %v1969 = vunpack.c.l.b16 %v1801
        %v1970 = vunpack.c.h.b16 %v1801
        %v1971 = vunpack.c.l.b16 %v1802
        %v1972 = vunpack.c.h.b16 %v1802
        %v1973 = vunpack.c.l.b16 %v1803
        %v1974 = vunpack.c.h.b16 %v1803
        %v1975 = vunpack.c.l.b16 %v1804
        %v1976 = vunpack.c.h.b16 %v1804
        %v1977 = vunpack.c.l.b16 %v1805
        %v1978 = vunpack.c.h.b16 %v1805
        %v1979 = vunpack.c.l.b16 %v1806
        %v1980 = vunpack.c.h.b16 %v1806
        %v1981 = vunpack.c.l.b16 %v1807
        %v1982 = vunpack.c.h.b16 %v1807
        %v1983 = vunpack.c.l.b16 %v1808
        %v1984 = vunpack.c.h.b16 %v1808
        %v1985 = vunpack.c.l.b16 %v1809
        %v1986 = vunpack.c.h.b16 %v1809
        %v1987 = vunpack.c.l.b16 %v1810
        %v1988 = vunpack.c.h.b16 %v1810
        %v1989 = vunpack.c.l.b16 %v1811
        %v1990 = vunpack.c.h.b16 %v1811
        %v1991 = vunpack.c.l.b16 %v1812
        %v1992 = vunpack.c.h.b16 %v1812
        %v1993 = vunpack.c.l.b16 %v1813
        %v1994 = vunpack.c.h.b16 %v1813
        %v1995 = vunpack.c.l.b16 %v1814
        %v1996 = vunpack.c.h.b16 %v1814
        %v1997 = vunpack.c.l.b16 %v1815
        %v1998 = vunpack.c.h.b16 %v1815
        %v1999 = vunpack.c.l.b16 %v1816
        %v2000 = vunpack.c.h.b16 %v1816
        %v2001 = vunpack.c.l.b16 %v1817
        %v2002 = vunpack.c.h.b16 %v1817
        %v2003 = vunpack.c.l.b16 %v1818
        %v2004 = vunpack.c.h.b16 %v1818
        %v2005 = vunpack.c.l.b16 %v1819
        %v2006 = vunpack.c.h.b16 %v1819
        %v2007 = vunpack.c.l.b16 %v1820
        %v2008 = vunpack.c.h.b16 %v1820
        %v2009 = vunpack.c.l.b16 %v1821
        %v2010 = vunpack.c.h.b16 %v1821
        %v2011 = vunpack.c.l.b16 %v1822
        %v2012 = vunpack.c.h.b16 %v1822
        %v2013 = vunpack.c.l.b16 %v1823
        %v2014 = vunpack.c.h.b16 %v1823
        %v2015 = vunpack.c.l.b16 %v1824
        %v2016 = vunpack.c.h.b16 %v1824
        %v2017 = vunpack.c.l.b16 %v1825
        %v2018 = vunpack.c.h.b16 %v1825
        %v2019 = vunpack.c.l.b16 %v1826
        %v2020 = vunpack.c.h.b16 %v1826
        %v2021 = vunpack.c.l.b16 %v1827
        %v2022 = vunpack.c.h.b16 %v1827
        %v2023 = vunpack.c.l.b16 %v1828
        %v2024 = vunpack.c.h.b16 %v1828
        %v2025 = vunpack.c.l.b16 %v1829
        %v2026 = vunpack.c.h.b16 %v1829
        %v2027 = vunpack.c.l.b16 %v1830
        %v2028 = vunpack.c.h.b16 %v1830
        %v2029 = vunpack.c.l.b16 %v1831
        %v2030 = vunpack.c.h.b16 %v1831
        %v2031 = vunpack.c.l.b16 %v1832
        %v2032 = vunpack.c.h.b16 %v1832
        %v2033 = vunpack.c.l.b16 %v1833
        %v2034 = vunpack.c.h.b16 %v1833
        %v2035 = vunpack.c.l.b16 %v1834
        %v2036 = vunpack.c.h.b16 %v1834
        %v2037 = vunpack.c.l.b16 %v1835
        %v2038 = vunpack.c.h.b16 %v1835
        %v2039 = vunpack.c.l.b16 %v1836
        %v2040 = vunpack.c.h.b16 %v1836
        %v2041 = vpack.c.b16 %v1915, %v1913
        %v2042 = vpack.c.b16 %v1916, %v1914
        %v2043 = vpack.c.b16 %v1919, %v1917
        %v2044 = vpack.c.b16 %v1920, %v1918
        %v2045 = vpack.c.b16 %v1923, %v1921
        %v2046 = vpack.c.b16 %v1924, %v1922
        %v2047 = vpack.c.b16 %v1927, %v1925
        %v2048 = vpack.c.b16 %v1928, %v1926
        %v2049 = vpack.c.b16 %v1931, %v1929
        %v2050 = vpack.c.b16 %v1932, %v1930
        %v2051 = vpack.c.b16 %v1935, %v1933
        %v2052 = vpack.c.b16 %v1936, %v1934
        %v2053 = vpack.c.b16 %v1939, %v1937
        %v2054 = vpack.c.b16 %v1940, %v1938
        %v2055 = vpack.c.b16 %v1943, %v1941
        %v2056 = vpack.c.b16 %v1944, %v1942
        %v2057 = vpack.c.b16 %v1947, %v1945
        %v2058 = vpack.c.b16 %v1948, %v1946
        %v2059 = vpack.c.b16 %v1951, %v1949
        %v2060 = vpack.c.b16 %v1952, %v1950
        %v2061 = vpack.c.b16 %v1955, %v1953
        %v2062 = vpack.c.b16 %v1956, %v1954
        %v2063 = vpack.c.b16 %v1959, %v1957
        %v2064 = vpack.c.b16 %v1960, %v1958
        %v2065 = vpack.c.b16 %v1963, %v1961
        %v2066 = vpack.c.b16 %v1964, %v1962
        %v2067 = vpack.c.b16 %v1967, %v1965
        %v2068 = vpack.c.b16 %v1968, %v1966
        %v2069 = vpack.c.b16 %v1971, %v1969
        %v2070 = vpack.c.b16 %v1972, %v1970
        %v2071 = vpack.c.b16 %v1975, %v1973
        %v2072 = vpack.c.b16 %v1976, %v1974
        %v2073 = vpack.c.b16 %v1979, %v1977
        %v2074 = vpack.c.b16 %v1980, %v1978
        %v2075 = vpack.c.b16 %v1983, %v1981
        %v2076 = vpack.c.b16 %v1984, %v1982
        %v2077 = vpack.c.b16 %v1987, %v1985
        %v2078 = vpack.c.b16 %v1988, %v1986
        %v2079 = vpack.c.b16 %v1991, %v1989
        %v2080 = vpack.c.b16 %v1992, %v1990
        %v2081 = vpack.c.b16 %v1995, %v1993
        %v2082 = vpack.c.b16 %v1996, %v1994
        %v2083 = vpack.c.b16 %v1999, %v1997
        %v2084 = vpack.c.b16 %v2000, %v1998
        %v2085 = vpack.c.b16 %v2003, %v2001
        %v2086 = vpack.c.b16 %v2004, %v2002
        %v2087 = vpack.c.b16 %v2007, %v2005
        %v2088 = vpack.c.b16 %v2008, %v2006
        %v2089 = vpack.c.b16 %v2011, %v2009
        %v2090 = vpack.c.b16 %v2012, %v2010
        %v2091 = vpack.c.b16 %v2015, %v2013
        %v2092 = vpack.c.b16 %v2016, %v2014
        %v2093 = vpack.c.b16 %v2019, %v2017
        %v2094 = vpack.c.b16 %v2020, %v2018
        %v2095 = vpack.c.b16 %v2023, %v2021
        %v2096 = vpack.c.b16 %v2024, %v2022
        %v2097 = vpack.c.b16 %v2027, %v2025
        %v2098 = vpack.c.b16 %v2028, %v2026
        %v2099 = vpack.c.b16 %v2031, %v2029
        %v2100 = vpack.c.b16 %v2032, %v2030
        %v2101 = vpack.c.b16 %v2035, %v2033
        %v2102 = vpack.c.b16 %v2036, %v2034
        %v2103 = vpack.c.b16 %v2039, %v2037
        %v2104 = vpack.c.b16 %v2040, %v2038
        %2169 = vmatprep.subr.bf16.mxu0 %v2056
        %2170 = vmatpush1.bf16.msra.mxu0 %v2055
        %2171 = vmatprep.subr.bf16.mxu0 %v2054
        %2172 = vmatpush1.bf16.msra.mxu0 %v2053
        %2173 = vmatprep.subr.bf16.mxu0 %v2052
        %2174 = vmatpush1.bf16.msra.mxu0 %v2051
        %2175 = vmatprep.subr.bf16.mxu0 %v2050
        %2176 = vmatpush1.bf16.msra.mxu0 %v2049
        %2177 = vmatprep.subr.bf16.mxu0 %v2048
        %2178 = vmatpush1.bf16.msra.mxu0 %v2047
        %2179 = vmatprep.subr.bf16.mxu0 %v2046
        %2180 = vmatpush1.bf16.msra.mxu0 %v2045
        %2181 = vmatprep.subr.bf16.mxu0 %v2044
        %2182 = vmatpush1.bf16.msra.mxu0 %v2043
        %2183 = vmatprep.subr.bf16.mxu0 %v2042
        %2184 = vmatpush1.bf16.msra.mxu0 %v2041
        %2185 = vmatprep.subr.bf16.mxu0 %v2072
        %2186 = vmatpush2.bf16.msra.mxu0 %v2071
        %2187 = vmatprep.subr.bf16.mxu0 %v2070
        %2188 = vmatpush2.bf16.msra.mxu0 %v2069
        %2189 = vmatprep.subr.bf16.mxu0 %v2068
        %2190 = vmatpush2.bf16.msra.mxu0 %v2067
        %2191 = vmatprep.subr.bf16.mxu0 %v2066
        %2192 = vmatpush2.bf16.msra.mxu0 %v2065
        %2193 = vmatprep.subr.bf16.mxu0 %v2064
        %2194 = vmatpush2.bf16.msra.mxu0 %v2063
        %2195 = vmatprep.subr.bf16.mxu0 %v2062
        %2196 = vmatpush2.bf16.msra.mxu0 %v2061
        %2197 = vmatprep.subr.bf16.mxu0 %v2060
        %2198 = vmatpush2.bf16.msra.mxu0 %v2059
        %2199 = vmatprep.subr.bf16.mxu0 %v2058
        %2200 = vmatpush2.bf16.msra.mxu0 %v2057
        %2201 = vmatprep.mubr.bf16.mxu0 %v1770
        %2202 = vmatmul.mubr.bf16.gmra.mxu0 %v1769
        %v2203 = vpop.f32.mrf.mxu0
        %v2204 = vadd.f32 %v1842, %v2203
        %v2205 = vpop.f32.mrf.mxu0
        %v2206 = vadd.f32 %v1846, %v2205
        %v2207 = vpop.f32.mrf.mxu0
        %v2208 = vpop.f32.mrf.mxu0
        %2209 = vdwg.mxu0
        %2210 = vmatprep.subr.bf16.mxu0 %v2088
        %2211 = vmatpush1.bf16.msra.mxu0 %v2087
        %2212 = vmatprep.subr.bf16.mxu0 %v2086
        %2213 = vmatpush1.bf16.msra.mxu0 %v2085
        %2214 = vmatprep.subr.bf16.mxu0 %v2084
        %2215 = vmatpush1.bf16.msra.mxu0 %v2083
        %2216 = vmatprep.subr.bf16.mxu0 %v2082
        %2217 = vmatpush1.bf16.msra.mxu0 %v2081
        %2218 = vmatprep.subr.bf16.mxu0 %v2080
        %2219 = vmatpush1.bf16.msra.mxu0 %v2079
        %2220 = vmatprep.subr.bf16.mxu0 %v2078
        %2221 = vmatpush1.bf16.msra.mxu0 %v2077
        %2222 = vmatprep.subr.bf16.mxu0 %v2076
        %2223 = vmatpush1.bf16.msra.mxu0 %v2075
        %2224 = vmatprep.subr.bf16.mxu0 %v2074
        %2225 = vmatpush1.bf16.msra.mxu0 %v2073
        %2226 = vmatprep.subr.bf16.mxu0 %v2104
        %2227 = vmatpush2.bf16.msra.mxu0 %v2103
        %2228 = vmatprep.subr.bf16.mxu0 %v2102
        %2229 = vmatpush2.bf16.msra.mxu0 %v2101
        %2230 = vmatprep.subr.bf16.mxu0 %v2100
        %2231 = vmatpush2.bf16.msra.mxu0 %v2099
        %2232 = vmatprep.subr.bf16.mxu0 %v2098
        %2233 = vmatpush2.bf16.msra.mxu0 %v2097
        %2234 = vmatprep.subr.bf16.mxu0 %v2096
        %2235 = vmatpush2.bf16.msra.mxu0 %v2095
        %2236 = vmatprep.subr.bf16.mxu0 %v2094
        %2237 = vmatpush2.bf16.msra.mxu0 %v2093
        %2238 = vmatprep.subr.bf16.mxu0 %v2092
        %2239 = vmatpush2.bf16.msra.mxu0 %v2091
        %2240 = vmatprep.subr.bf16.mxu0 %v2090
        %2241 = vmatpush2.bf16.msra.mxu0 %v2089
        %2242 = vmatprep.mubr.bf16.mxu0 %v1772
        %2243 = vmatmul.mubr.bf16.gmra.mxu0 %v1771
        %v2244 = vpop.f32.mrf.mxu0
        %v2245 = vadd.f32 %v2204, %v2244
        %v2246 = vpop.f32.mrf.mxu0
        %v2247 = vadd.f32 %v2206, %v2246
        %v2248 = vpop.f32.mrf.mxu0
        %v2249 = vpop.f32.mrf.mxu0
        %2250 = vdwg.mxu0
        %v2251 = vmax.f32 %v2245, 0.0
        %v2252 = vmax.f32 %v2247, 0.0
        %v2253 = vpack.c.bf16 %v2251, %v2251
        %v2254 = vpack.c.bf16 %v2252, %v2252
        %v2255 = vld [vmem:[%s11] sm:$0xf]
        %v2256 = vld [vmem:[%s11 + $0x4] sm:$0xf]
        %v2257 = vld [vmem:[%s11 + $0x8] sm:$0xf]
        %v2258 = vld [vmem:[%s11 + $0xc] sm:$0xf]
        %v2259 = vld [vmem:[%s11 + $0x10] sm:$0xf]
        %v2260 = vld [vmem:[%s11 + $0x14] sm:$0xf]
        %v2261 = vld [vmem:[%s11 + $0x18] sm:$0xf]
        %v2262 = vld [vmem:[%s11 + $0x1c] sm:$0xf]
        %v2263 = vld [vmem:[%s11 + $0x20] sm:$0xf]
        %v2264 = vld [vmem:[%s11 + $0x24] sm:$0xf]
        %v2265 = vld [vmem:[%s11 + $0x28] sm:$0xf]
        %v2266 = vld [vmem:[%s11 + $0x2c] sm:$0xf]
        %v2267 = vld [vmem:[%s11 + $0x30] sm:$0xf]
        %v2268 = vld [vmem:[%s11 + $0x34] sm:$0xf]
        %v2269 = vld [vmem:[%s11 + $0x38] sm:$0xf]
        %v2270 = vld [vmem:[%s11 + $0x3c] sm:$0xf]
        %v2271 = vld [vmem:[%s11 + $0x40] sm:$0xf]
        %v2272 = vld [vmem:[%s11 + $0x44] sm:$0xf]
        %v2273 = vld [vmem:[%s11 + $0x48] sm:$0xf]
        %v2274 = vld [vmem:[%s11 + $0x4c] sm:$0xf]
        %v2275 = vld [vmem:[%s11 + $0x50] sm:$0xf]
        %v2276 = vld [vmem:[%s11 + $0x54] sm:$0xf]
        %v2277 = vld [vmem:[%s11 + $0x58] sm:$0xf]
        %v2278 = vld [vmem:[%s11 + $0x5c] sm:$0xf]
        %v2279 = vld [vmem:[%s11 + $0x60] sm:$0xf]
        %v2280 = vld [vmem:[%s11 + $0x64] sm:$0xf]
        %v2281 = vld [vmem:[%s11 + $0x68] sm:$0xf]
        %v2282 = vld [vmem:[%s11 + $0x6c] sm:$0xf]
        %v2283 = vld [vmem:[%s11 + $0x70] sm:$0xf]
        %v2284 = vld [vmem:[%s11 + $0x74] sm:$0xf]
        %v2285 = vld [vmem:[%s11 + $0x78] sm:$0xf]
        %v2286 = vld [vmem:[%s11 + $0x7c] sm:$0xf]
        %v2287 = vld [vmem:[#allocation2] sm:$0x1]
        %v2289 = vlaneseq
        %v2290 = vshrl.u32 %v2289, 7
        %v2291 = vsub.s32 0, %v2290
        %v2292 = vrot.slane %v2287, %v2291
        %v2326 = vunpack.c.l.b16 %v2255
        %v2327 = vunpack.c.l.b16 %v2256
        %v2328 = vunpack.c.l.b16 %v2257
        %v2329 = vunpack.c.l.b16 %v2258
        %v2330 = vunpack.c.l.b16 %v2259
        %v2331 = vunpack.c.l.b16 %v2260
        %v2332 = vunpack.c.l.b16 %v2261
        %v2333 = vunpack.c.l.b16 %v2262
        %v2334 = vunpack.c.l.b16 %v2263
        %v2335 = vunpack.c.l.b16 %v2264
        %v2336 = vunpack.c.l.b16 %v2265
        %v2337 = vunpack.c.l.b16 %v2266
        %v2338 = vunpack.c.l.b16 %v2267
        %v2339 = vunpack.c.l.b16 %v2268
        %v2340 = vunpack.c.l.b16 %v2269
        %v2341 = vunpack.c.l.b16 %v2270
        %v2342 = vunpack.c.l.b16 %v2271
        %v2343 = vunpack.c.l.b16 %v2272
        %v2344 = vunpack.c.l.b16 %v2273
        %v2345 = vunpack.c.l.b16 %v2274
        %v2346 = vunpack.c.l.b16 %v2275
        %v2347 = vunpack.c.l.b16 %v2276
        %v2348 = vunpack.c.l.b16 %v2277
        %v2349 = vunpack.c.l.b16 %v2278
        %v2350 = vunpack.c.l.b16 %v2279
        %v2351 = vunpack.c.l.b16 %v2280
        %v2352 = vunpack.c.l.b16 %v2281
        %v2353 = vunpack.c.l.b16 %v2282
        %v2354 = vunpack.c.l.b16 %v2283
        %v2355 = vunpack.c.l.b16 %v2284
        %v2356 = vunpack.c.l.b16 %v2285
        %v2357 = vunpack.c.l.b16 %v2286
        %v2358 = vpack.c.b16 %v2327, %v2326
        %v2359 = vpack.c.b16 %v2329, %v2328
        %v2360 = vpack.c.b16 %v2331, %v2330
        %v2361 = vpack.c.b16 %v2333, %v2332
        %v2362 = vpack.c.b16 %v2335, %v2334
        %v2363 = vpack.c.b16 %v2337, %v2336
        %v2364 = vpack.c.b16 %v2339, %v2338
        %v2365 = vpack.c.b16 %v2341, %v2340
        %v2366 = vpack.c.b16 %v2343, %v2342
        %v2367 = vpack.c.b16 %v2345, %v2344
        %v2368 = vpack.c.b16 %v2347, %v2346
        %v2369 = vpack.c.b16 %v2349, %v2348
        %v2370 = vpack.c.b16 %v2351, %v2350
        %v2371 = vpack.c.b16 %v2353, %v2352
        %v2372 = vpack.c.b16 %v2355, %v2354
        %v2373 = vpack.c.b16 %v2357, %v2356
        %2390 = vmatprep.subr.bf16.mxu0 0
        %2391 = vmatpush1.bf16.msra.mxu0 %v2365
        %2392 = vmatprep.subr.bf16.mxu0 0
        %2393 = vmatpush1.bf16.msra.mxu0 %v2364
        %2394 = vmatprep.subr.bf16.mxu0 0
        %2395 = vmatpush1.bf16.msra.mxu0 %v2363
        %2396 = vmatprep.subr.bf16.mxu0 0
        %2397 = vmatpush1.bf16.msra.mxu0 %v2362
        %2398 = vmatprep.subr.bf16.mxu0 0
        %2399 = vmatpush1.bf16.msra.mxu0 %v2361
        %2400 = vmatprep.subr.bf16.mxu0 0
        %2401 = vmatpush1.bf16.msra.mxu0 %v2360
        %2402 = vmatprep.subr.bf16.mxu0 0
        %2403 = vmatpush1.bf16.msra.mxu0 %v2359
        %2404 = vmatprep.subr.bf16.mxu0 0
        %2405 = vmatpush1.bf16.msra.mxu0 %v2358
        %2406 = vmatprep.subr.bf16.mxu0 0
        %2407 = vmatpush2.bf16.msra.mxu0 %v2373
        %2408 = vmatprep.subr.bf16.mxu0 0
        %2409 = vmatpush2.bf16.msra.mxu0 %v2372
        %2410 = vmatprep.subr.bf16.mxu0 0
        %2411 = vmatpush2.bf16.msra.mxu0 %v2371
        %2412 = vmatprep.subr.bf16.mxu0 0
        %2413 = vmatpush2.bf16.msra.mxu0 %v2370
        %2414 = vmatprep.subr.bf16.mxu0 0
        %2415 = vmatpush2.bf16.msra.mxu0 %v2369
        %2416 = vmatprep.subr.bf16.mxu0 0
        %2417 = vmatpush2.bf16.msra.mxu0 %v2368
        %2418 = vmatprep.subr.bf16.mxu0 0
        %2419 = vmatpush2.bf16.msra.mxu0 %v2367
        %2420 = vmatprep.subr.bf16.mxu0 0
        %2421 = vmatpush2.bf16.msra.mxu0 %v2366
        %2422 = vmatprep.mubr.bf16.mxu0 %v2254
        %2423 = vmatmul.mubr.bf16.gmra.mxu0 %v2253
        %v2424 = vpop.f32.mrf.mxu0
        %v2425 = vadd.f32 %v2292, %v2424
        %v2426 = vpop.f32.mrf.mxu0
        %v2427 = vpop.f32.mrf.mxu0
        %v2428 = vpop.f32.mrf.mxu0
        %2429 = vdwg.mxu0
        %v2430 = vsub.f32 0.0, %v2425
        %v2431 = vmul.f32 %v2430, 1.442695
        %v2432 = vpow.pop %v2431
        %v2433 = vadd.f32 %v2432, 1.0
        %v2434 = vrcp.pop %v2433
        %2435 = vst.msk [vmem:[%s554] sm:$0xff] %vm585, %v2434
        %p2436 = scmp.lt.s32.totalorder %s31, 3
        %s2437 = scalar_select %p2436, %s31, 3
        %s2438 = smul.addr %s2437, 8
        %s2439 = scalar_lea.vmem %s13, %s2438
        // Predicated region
        $region101: #{tpu_custom_call.1} parent=71 // pred_check
          %p2440 = pneg %p332
        $region102: #{tpu_custom_call.1} parent=71 // pred_check_branch
          %2442 = sbr.rel (%p2440) target = $region104
        $region103: #{tpu_custom_call.1} parent=71 // pred_region
          _
        $region104: #{tpu_custom_call.1} parent=71 // pred_fallthru
          _
      $region72: #{tpu_custom_call.1} parent=5 // pred_fallthru
        _
      %p2443 = scmp.le.s32.totalorder 2, %s26
      // Predicated region
      $region105: #{tpu_custom_call.1} parent=5 // pred_check
        %p2444 = pneg %p2443
      $region106: #{tpu_custom_call.1} parent=5 // pred_check_branch
        %2446 = sbr.rel (%p2444) target = $region108
      $region107: #{tpu_custom_call.1} parent=5 // pred_region
        %s2447 = ssub.s32 %s26, 2
        // Predicated region
        $region109: #{tpu_custom_call.1} parent=107 // pred_check
          %p2448 = pneg %p338
        $region110: #{tpu_custom_call.1} parent=107 // pred_check_branch
          %2450 = sbr.rel (%p2448) target = $region112
        $region111: #{tpu_custom_call.1} parent=107 // pred_region
          %p2451 = scmp.lt.s32.totalorder %s32, 3
          %s2452 = scalar_select %p2451, %s32, 3
          %s2453 = smul.addr %s2452, 8
          %s2454 = scalar_lea.vmem %s13, %s2453
        $region112: #{tpu_custom_call.1} parent=107 // pred_fallthru
          _
      $region108: #{tpu_custom_call.1} parent=5 // pred_fallthru
        _
    $region6: #{tpu_custom_call.1} parent=1 // loop_footer
      %s30 = sadd.s32 1, %s26
    $region7: #{tpu_custom_call.1} parent=1 // loop_footer_branch
      %25 = sbr.rel target = $region3
    $region8: #{tpu_custom_call.1} parent=1 // loop_exit
      _
    %2455 = vsyncpa [#allocation4], 1
    %s2456 = scalar_lea.sflag [#allocation4], 1
    %2457 = vsyncpa %s2456, 1
    %2458 = vsyncpa [#allocation13], 1
    %2459 = vsyncpa [#allocation5], 1
    %s2460 = scalar_lea.sflag [#allocation5], 1
    %2461 = vsyncpa %s2460, 1
    %2462 = vsyncpa [#allocation6], 1
    %s2463 = scalar_lea.sflag [#allocation6], 1
    %2464 = vsyncpa %s2463, 1
    %2465 = vsyncpa [#allocation9], 1

</llo_original>
